<compile_context>
chip_gen: v5e
topology: v5e:2x2
jax: 0.10.0
libtpu: 0.0.40
codegen_flags: <defaults>
</compile_context>

<pallas_src>
import jax
import jax.numpy as jnp
from jax import lax
from jax.experimental import pallas as pl
from jax.experimental.pallas import tpu as pltpu


# ----------------------------- Pallas kernel --------------------------------
def rib2_kernel(
    x_ref,        # (L*Bt, 2E) bf16  pre-flattened item+behavior embeddings (time-major)
    lencol_ref,   # (Bt, 1)   f32    per-row sequence lengths
    attmask_ref,  # (L, Bt)   f32    1.0 where item_seq != item_num (time-major)
    h0_ref,       # (Bt, 2H)  f32    concatenated initial hidden [h_gru | h_gru2]
    wih_ref,      # (2E, 6H)  bf16   combined input weights, gate order [r1 r2 z1 z2 n1 n2]
    whh_ref,      # (2H, 6H)  bf16   block-diagonal combined hidden weights
    bih_ref,      # (1, 6H)   f32
    bhh_ref,      # (1, 6H)   f32
    fc2w_ref,     # (1, H)    f32
    fc2b_ref,     # (1, 1)    f32    (SMEM scalar)
    h2ow_ref,     # (H, Np)   bf16   item_num padded to a multiple of 128 lanes
    h2ob_ref,     # (1, Np)   f32
    out_ref,      # (Bt, Np)  f32
    g_scr,        # (L, Bt, H) f32   VMEM scratch: masked gru_out per step
):
    L, Bt, H = g_scr.shape
    H2 = 2 * H

    # ---- hoisted weight / mask loads (reused across every unrolled step) ----
    whh = whh_ref[...]                      # (2H, 6H) bf16
    bhh = bhh_ref[...]                      # (1, 6H)  f32
    lencol = lencol_ref[...]                # (Bt, 1)  f32

    # ---- input-side matmuls for BOTH GRUs and ALL timesteps in ONE MXU call -
    # bf16 x bf16 -> f32 accumulation; x was flattened to (L*Bt, 2E) in the wrapper.
    gi_all = (
        jnp.dot(x_ref[...], wih_ref[...], preferred_element_type=jnp.float32)
        + bih_ref[...]
    )                                       # (L*Bt, 6H) f32

    # ---- recurrence: only the hidden matmul + gates + freeze on the serial
    #      chain; per-step result stored into the VMEM slab (no live lists).
    #      L is small & static here -> full unroll; for production L use
    #      lax.fori_loop(..., unroll=True) over modest chunks.
    hcat = h0_ref[...]                      # (Bt, 2H) f32  [h_gru | h_gru2]
    for t in range(L):
        gi = gi_all[t * Bt:(t + 1) * Bt, :]                           # (Bt, 6H)
        gh = jnp.dot(hcat.astype(jnp.bfloat16), whh,
                     preferred_element_type=jnp.float32) + bhh        # (Bt, 6H)
        r = jax.nn.sigmoid(gi[:, :H2] + gh[:, :H2])                   # (Bt, 2H)
        z = jax.nn.sigmoid(gi[:, H2:2 * H2] + gh[:, H2:2 * H2])
        n = jnp.tanh(gi[:, 2 * H2:] + r * gh[:, 2 * H2:])
        h_new = (1.0 - z) * n + z * hcat                              # (Bt, 2H)

        # packed-sequence semantics: freeze hidden past len, zero the output.
        keep = lencol > jnp.float32(t)                                # (Bt, 1)
        hcat = jnp.where(keep, h_new, hcat)
        g_scr[t] = jnp.where(keep, 0.5 * (h_new[:, :H] + h_new[:, H:]), 0.0)

    # ---- post-loop slab ops: tanh + attention logits + masked softmax + pool -
    g = g_scr[...]                                                    # (L, Bt, H)
    fc2w = fc2w_ref[...].reshape(1, 1, H)
    att = jnp.sum(jnp.tanh(g) * fc2w, axis=-1) + fc2b_ref[0, 0]       # (L, Bt)
    neg = jnp.float32(-2.0 ** 32 + 1)
    att = jnp.where(attmask_ref[...] > 0.0, att, neg)
    att_max = jnp.max(att, axis=0, keepdims=True)
    e = jnp.exp(att - att_max)
    p = e * pl.reciprocal(jnp.sum(e, axis=0, keepdims=True), approx=True)  # (L, Bt)
    final = jnp.sum(g * p[:, :, None], axis=0)                        # (Bt, H) f32

    # ---- output projection (bf16 MXU operands, f32 accumulate, lane-dense Np)
    # dropout == identity (inference)
    out_ref[...] = (
        jnp.dot(final.astype(jnp.bfloat16), h2ow_ref[...],
                preferred_element_type=jnp.float32)
        + h2ob_ref[...]
    )


# ------------------------------- wrapper -------------------------------------
def _combine_params(params, H, item_num, n_pad):
    """Fuse both GRUs' weights (gate column order [r1 r2 z1 z2 n1 n2]) and pad h2o."""
    def interleave(a, b):
        return jnp.concatenate(
            [a[:, :H], b[:, :H],
             a[:, H:2 * H], b[:, H:2 * H],
             a[:, 2 * H:], b[:, 2 * H:]], axis=1)

    wih = interleave(params["wih1"], params["wih2"])       # (2E, 6H)
    bih = interleave(params["bih1"], params["bih2"])       # (1, 6H)
    bhh = interleave(params["bhh1"], params["bhh2"])       # (1, 6H)

    z = jnp.zeros((H, H), jnp.float32)
    w1, w2 = params["whh1"], params["whh2"]
    top = jnp.concatenate([w1[:, :H], z, w1[:, H:2 * H], z, w1[:, 2 * H:], z], axis=1)
    bot = jnp.concatenate([z, w2[:, :H], z, w2[:, H:2 * H], z, w2[:, 2 * H:]], axis=1)
    whh = jnp.concatenate([top, bot], axis=0)              # (2H, 6H) block-diagonal

    h2ow = jnp.pad(params["h2ow"], ((0, 0), (0, n_pad - item_num)))
    h2ob = jnp.pad(params["h2ob"], ((0, 0), (0, n_pad - item_num)))
    return wih, whh, bih, bhh, h2ow, h2ob


def rib2_forward(x_tm, len_seq, attmask_bl, h0, h1, params, item_num):
    L, B, E2 = x_tm.shape                       # E2 = 2 * emb_size
    H = h0.shape[-1]

    # Batch tiling: as large a tile as VMEM comfortably allows (amortizes the
    # latency-bound per-step hidden matmul); grid over tiles is "parallel" so
    # both v7x TensorCores get work. Cap chosen conservatively for v7x's 32 MiB
    # scoped VMEM budget at production L / item catalogs.
    MAX_BT = 256
    Bt = min(((B + 7) // 8) * 8, MAX_BT)
    nbt = -(-B // Bt)                           # ceil
    Bp = nbt * Bt
    n_pad = ((item_num + 127) // 128) * 128     # lane-dense output stores

    def pad_batch(a, axis):
        widths = [(0, 0)] * a.ndim
        widths[axis] = (0, Bp - B)
        return jnp.pad(a, widths)

    # x: (L,B,2E) -> per-tile, pre-flattened (nbt, L*Bt, 2E), bf16 MXU operand.
    x_p = pad_batch(x_tm, 1)                                            # (L, Bp, 2E)
    x_p = (x_p.reshape(L, nbt, Bt, E2).transpose(1, 0, 2, 3)
           .reshape(nbt, L * Bt, E2).astype(jnp.bfloat16))
    # per-row lengths as a (Bt,1) column -> one compare per step in the kernel
    len_col = pad_batch(len_seq.astype(jnp.float32)[:, None], 0).reshape(nbt, Bt, 1)
    # attention mask, time-major per tile (natural layout for post-loop softmax)
    am_p = pad_batch(attmask_bl, 0).reshape(nbt, Bt, L).transpose(0, 2, 1)  # (nbt,L,Bt)
    # concatenated initial hidden
    h_p = pad_batch(jnp.concatenate([h0, h1], axis=1), 0).reshape(nbt, Bt, 2 * H)

    wih, whh, bih, bhh, h2ow, h2ob = _combine_params(params, H, item_num, n_pad)
    wih = wih.astype(jnp.bfloat16)
    whh = whh.astype(jnp.bfloat16)
    h2ow = h2ow.astype(jnp.bfloat16)

    flops = 2 * L * Bp * (E2 * 6 * H + 2 * H * 6 * H) + 2 * Bp * H * n_pad
    trans = L * Bp * (6 * H + H) + L * Bp       # sigmoid/tanh gates + att tanh + exp
    bytes_acc = (x_p.size * 2 + wih.size * 2 + whh.size * 2 + h2ow.size * 2
                 + (bih.size + bhh.size + h2ob.size + h_p.size + am_p.size
                    + len_col.size) * 4 + Bp * n_pad * 4)

    kernel = pl.pallas_call(
        rib2_kernel,
        grid=(nbt,),
        out_shape=jax.ShapeDtypeStruct((Bp, n_pad), jnp.float32),
        in_specs=[
            pl.BlockSpec((None, L * Bt, E2), lambda i: (i, 0, 0)),   # x (per tile)
            pl.BlockSpec((None, Bt, 1), lambda i: (i, 0, 0)),        # len column
            pl.BlockSpec((None, L, Bt), lambda i: (i, 0, 0)),        # att mask
            pl.BlockSpec((None, Bt, 2 * H), lambda i: (i, 0, 0)),    # h0 cat
            pl.BlockSpec((E2, 6 * H), lambda i: (0, 0)),             # wih
            pl.BlockSpec((2 * H, 6 * H), lambda i: (0, 0)),          # whh
            pl.BlockSpec((1, 6 * H), lambda i: (0, 0)),              # bih
            pl.BlockSpec((1, 6 * H), lambda i: (0, 0)),              # bhh
            pl.BlockSpec((1, H), lambda i: (0, 0)),                  # fc2w
            pl.BlockSpec(memory_space=pltpu.MemorySpace.SMEM),       # fc2b scalar
            pl.BlockSpec((H, n_pad), lambda i: (0, 0)),              # h2o weight
            pl.BlockSpec((1, n_pad), lambda i: (0, 0)),              # h2o bias
        ],
        out_specs=pl.BlockSpec((Bt, n_pad), lambda i: (i, 0)),
        scratch_shapes=[pltpu.VMEM((L, Bt, H), jnp.float32)],
        compiler_params=pltpu.CompilerParams(dimension_semantics=("parallel",)),
        cost_estimate=pl.CostEstimate(flops=flops, transcendentals=trans,
                                      bytes_accessed=bytes_acc),
    )
    out = kernel(x_p, len_col, am_p, h_p, wih, whh, bih, bhh,
                 params["fc2w"], params["fc2b"], h2ow, h2ob)
    return out[:B, :item_num]


# --------------------------- pure-JAX reference -------------------------------
def rib2_reference(x_tm, lenmask, attmask, h0, h1, params):
    def run_gru(h_init, wih, whh, bih, bhh):
        def step(h, inp):
            x_t, m_t = inp
            gi = x_t @ wih + bih
            gh = h @ whh + bhh
            i_r, i_z, i_n = jnp.split(gi, 3, axis=-1)
            h_r, h_z, h_n = jnp.split(gh, 3, axis=-1)
            r = jax.nn.sigmoid(i_r + h_r)
            z = jax.nn.sigmoid(i_z + h_z)
            n = jnp.tanh(i_n + r * h_n)
            h_new = (1.0 - z) * n + z * h
            return jnp.where(m_t > 0, h_new, h), jnp.where(m_t > 0, h_new, 0.0)
        _, outs = lax.scan(step, h_init, (x_tm, lenmask))
        return outs

    o1 = run_gru(h0, params["wih1"], params["whh1"], params["bih1"], params["bhh1"])
    o2 = run_gru(h1, params["wih2"], params["whh2"], params["bih2"], params["bhh2"])
    gout = 0.5 * (o1 + o2)                                       # (L, B, H)
    att = jnp.sum(jnp.tanh(gout) * params["fc2w"][None], axis=-1,
                  keepdims=True) + params["fc2b"][0, 0]
    att = jnp.where(attmask > 0, att, jnp.float32(-2.0 ** 32 + 1))
    p = jax.nn.softmax(att, axis=0)
    final = jnp.sum(gout * p, axis=0)
    return final @ params["h2ow"] + params["h2ob"]


# --------------------------------- main ---------------------------------------
if __name__ == "__main__":
    B, L, E = 2, 8, 32            # batch, seq_len, emb_size (= hidden)
    H = E
    item_num = 64
    behavior_num = 2

    key = jax.random.PRNGKey(0)
    ks = jax.random.split(key, 24)

    # ------ deterministic parameter init (shapes match the torch module) ------
    item_table = 0.1 * jax.random.normal(ks[0], (item_num + 1, E), jnp.float32)
    item_table = item_table.at[item_num].set(0.0)               # padding_idx
    beh_table = 0.1 * jax.random.normal(ks[1], (behavior_num + 1, E), jnp.float32)
    beh_table = beh_table.at[behavior_num].set(0.0)             # padding_idx

    def gru_params(k):
        k1, k2, k3, k4 = jax.random.split(k, 4)
        return dict(
            wih=0.1 * jax.random.normal(k1, (2 * E, 3 * H), jnp.float32),
            whh=0.1 * jax.random.normal(k2, (H, 3 * H), jnp.float32),
            bih=0.1 * jax.random.normal(k3, (1, 3 * H), jnp.float32),
            bhh=0.1 * jax.random.normal(k4, (1, 3 * H), jnp.float32),
        )

    g1, g2 = gru_params(ks[2]), gru_params(ks[3])
    params = dict(
        wih1=g1["wih"], whh1=g1["whh"], bih1=g1["bih"], bhh1=g1["bhh"],
        wih2=g2["wih"], whh2=g2["whh"], bih2=g2["bih"], bhh2=g2["bhh"],
        fc2w=0.1 * jax.random.normal(ks[4], (1, H), jnp.float32),
        fc2b=0.1 * jax.random.normal(ks[5], (1, 1), jnp.float32),
        h2ow=0.1 * jax.random.normal(ks[6], (H, item_num), jnp.float32),
        h2ob=0.1 * jax.random.normal(ks[7], (1, item_num), jnp.float32),
    )

    # ------------------------------- inputs -----------------------------------
    len_seq = jnp.array([8, 5], dtype=jnp.int32)                # per-batch lengths
    pos = jnp.arange(L)
    valid = pos[None, :] < len_seq[:, None]                     # (B, L) bool
    item_seq = jnp.where(valid,
                         jax.random.randint(ks[8], (B, L), 0, item_num), item_num)
    behavior_seq = jnp.where(valid,
                             jax.random.randint(ks[9], (B, L), 0, behavior_num),
                             behavior_num)
    h0 = 0.1 * jax.random.normal(ks[10], (B, H), jnp.float32)   # gru init hidden
    h1 = 0.1 * jax.random.normal(ks[11], (B, H), jnp.float32)   # gru2 init hidden

    # embedding lookup + concat (glue, plain JAX), then go time-major
    item_emb = item_table[item_seq]                             # (B, L, E)
    beh_emb = beh_table[behavior_seq]                           # (B, L, E)
    x = jnp.concatenate([item_emb, beh_emb], axis=-1)           # (B, L, 2E)
    x_tm = jnp.transpose(x, (1, 0, 2)).astype(jnp.float32)      # (L, B, 2E)

    attmask_bl = (item_seq != item_num).astype(jnp.float32)     # (B, L)

    out = rib2_forward(x_tm, len_seq, attmask_bl, h0, h1, params, item_num)
    out = jax.block_until_ready(out)

    # time-major (L, B, 1) masks for the pure-JAX f32 reference
    lenmask_tm = valid.astype(jnp.float32).T[:, :, None]
    attmask_tm = attmask_bl.T[:, :, None]
    ref = rib2_reference(x_tm, lenmask_tm, attmask_tm, h0, h1, params)

    assert out.shape == (B, item_num)
    # tolerance relaxed for bf16 MXU operands (f32 accumulate, f32 recurrent
    # state/gates) and pl.reciprocal(approx=True) in the softmax.
    assert jnp.allclose(out, ref, atol=2e-2, rtol=2e-2), "mismatch vs reference"

    print("KERNEL_OK")
</pallas_src>

<mosaic_0001>
module attributes {stable_mosaic.version = 11 : i64} {
  func.func @rib2_kernel(%arg0: i32, %arg1: memref<1x64x64xbf16, #tpu.memory_space<vmem>>, %arg2: memref<1x8x1xf32, #tpu.memory_space<vmem>>, %arg3: memref<1x8x8xf32, #tpu.memory_space<vmem>>, %arg4: memref<1x8x64xf32, #tpu.memory_space<vmem>>, %arg5: memref<64x192xbf16, #tpu.memory_space<vmem>>, %arg6: memref<64x192xbf16, #tpu.memory_space<vmem>>, %arg7: memref<1x192xf32, #tpu.memory_space<vmem>>, %arg8: memref<1x192xf32, #tpu.memory_space<vmem>>, %arg9: memref<1x32xf32, #tpu.memory_space<vmem>>, %arg10: memref<1x1xf32, #tpu.memory_space<smem>>, %arg11: memref<32x128xbf16, #tpu.memory_space<vmem>>, %arg12: memref<1x128xf32, #tpu.memory_space<vmem>>, %arg13: memref<8x128xf32, #tpu.memory_space<vmem>>, %arg14: memref<8x8x32xf32, #tpu.memory_space<vmem>>) attributes {dimension_semantics = [#tpu.dimension_semantics<parallel>], iteration_bounds = array<i64: 1>, scalar_prefetch = 0 : i64, scratch_operands = 1 : i64, tpu.core_type = #tpu.core_type<tc>, window_params = [{transform_indices = @transform_0, window_bounds = array<i64: 1, 64, 64>}, {transform_indices = @transform_1, window_bounds = array<i64: 1, 8, 1>}, {transform_indices = @transform_2, window_bounds = array<i64: 1, 8, 8>}, {transform_indices = @transform_3, window_bounds = array<i64: 1, 8, 64>}, {pipeline_mode = #tpu.pipeline_mode<synchronous>, transform_indices = @transform_4, window_bounds = array<i64: 64, 192>}, {pipeline_mode = #tpu.pipeline_mode<synchronous>, transform_indices = @transform_5, window_bounds = array<i64: 64, 192>}, {pipeline_mode = #tpu.pipeline_mode<synchronous>, transform_indices = @transform_6, window_bounds = array<i64: 1, 192>}, {pipeline_mode = #tpu.pipeline_mode<synchronous>, transform_indices = @transform_7, window_bounds = array<i64: 1, 192>}, {pipeline_mode = #tpu.pipeline_mode<synchronous>, transform_indices = @transform_8, window_bounds = array<i64: 1, 32>}, {transform_indices = @transform_9, window_bounds = array<i64: 1, 1>}, {pipeline_mode = #tpu.pipeline_mode<synchronous>, transform_indices = @transform_10, window_bounds = array<i64: 32, 128>}, {pipeline_mode = #tpu.pipeline_mode<synchronous>, transform_indices = @transform_11, window_bounds = array<i64: 1, 128>}, {transform_indices = @transform_12, window_bounds = array<i64: 8, 128>}]} {
    %c0 = arith.constant 0 : index
    %c0_0 = arith.constant 0 : index
    %0 = vector.load %arg6[%c0, %c0_0] : memref<64x192xbf16, #tpu.memory_space<vmem>>, vector<64x192xbf16>
    %c0_1 = arith.constant 0 : index
    %c0_2 = arith.constant 0 : index
    %1 = vector.load %arg8[%c0_1, %c0_2] : memref<1x192xf32, #tpu.memory_space<vmem>>, vector<1x192xf32>
    %c0_3 = arith.constant 0 : index
    %c0_4 = arith.constant 0 : index
    %c0_5 = arith.constant 0 : index
    %2 = vector.load %arg2[%c0_3, %c0_4, %c0_5] : memref<1x8x1xf32, #tpu.memory_space<vmem>>, vector<1x8x1xf32>
    %3 = vector.shape_cast %2 : vector<1x8x1xf32> to vector<8x1xf32>
    %c0_6 = arith.constant 0 : index
    %c0_7 = arith.constant 0 : index
    %c0_8 = arith.constant 0 : index
    %4 = vector.load %arg1[%c0_6, %c0_7, %c0_8] : memref<1x64x64xbf16, #tpu.memory_space<vmem>>, vector<1x64x64xbf16>
    %5 = vector.shape_cast %4 : vector<1x64x64xbf16> to vector<64x64xbf16>
    %c0_9 = arith.constant 0 : index
    %c0_10 = arith.constant 0 : index
    %6 = vector.load %arg5[%c0_9, %c0_10] : memref<64x192xbf16, #tpu.memory_space<vmem>>, vector<64x192xbf16>
    %cst = arith.constant dense<0.000000e+00> : vector<64x192xf32>
    %7 = tpu.matmul %5, %6, %cst {dimension_numbers = #tpu.dot_dimension_numbers<[1], [0], [0], [1], [0, 0, 1, 1], [], []>} : vector<64x64xbf16>, vector<64x192xbf16>, vector<64x192xf32> -> vector<64x192xf32>
    %c0_11 = arith.constant 0 : index
    %c0_12 = arith.constant 0 : index
    %8 = vector.load %arg7[%c0_11, %c0_12] : memref<1x192xf32, #tpu.memory_space<vmem>>, vector<1x192xf32>
    %9 = vector.broadcast %8 : vector<1x192xf32> to vector<64x192xf32>
    %10 = arith.addf %7, %9 : vector<64x192xf32>
    %c0_13 = arith.constant 0 : index
    %c0_14 = arith.constant 0 : index
    %c0_15 = arith.constant 0 : index
    %11 = vector.load %arg4[%c0_13, %c0_14, %c0_15] : memref<1x8x64xf32, #tpu.memory_space<vmem>>, vector<1x8x64xf32>
    %12 = vector.shape_cast %11 : vector<1x8x64xf32> to vector<8x64xf32>
    %13 = vector.extract_strided_slice %10 {offsets = [0, 0], sizes = [8, 192], strides = [1, 1]} : vector<64x192xf32> to vector<8x192xf32>
    %14 = arith.truncf %12 : vector<8x64xf32> to vector<8x64xbf16>
    %cst_16 = arith.constant dense<0.000000e+00> : vector<8x192xf32>
    %15 = tpu.matmul %14, %0, %cst_16 {dimension_numbers = #tpu.dot_dimension_numbers<[1], [0], [0], [1], [0, 0, 1, 1], [], []>} : vector<8x64xbf16>, vector<64x192xbf16>, vector<8x192xf32> -> vector<8x192xf32>
    %16 = vector.broadcast %1 : vector<1x192xf32> to vector<8x192xf32>
    %17 = arith.addf %15, %16 : vector<8x192xf32>
    %18 = vector.extract_strided_slice %13 {offsets = [0, 0], sizes = [8, 64], strides = [1, 1]} : vector<8x192xf32> to vector<8x64xf32>
    %19 = vector.extract_strided_slice %17 {offsets = [0, 0], sizes = [8, 64], strides = [1, 1]} : vector<8x192xf32> to vector<8x64xf32>
    %20 = arith.addf %18, %19 : vector<8x64xf32>
    %21 = arith.negf %20 : vector<8x64xf32>
    %22 = math.exp %21 : vector<8x64xf32>
    %cst_17 = arith.constant 1.000000e+00 : f32
    %23 = vector.broadcast %cst_17 : f32 to vector<8x64xf32>
    %24 = arith.addf %23, %22 : vector<8x64xf32>
    %25 = arith.divf %23, %24 : vector<8x64xf32>
    %26 = vector.extract_strided_slice %13 {offsets = [0, 64], sizes = [8, 64], strides = [1, 1]} : vector<8x192xf32> to vector<8x64xf32>
    %27 = vector.extract_strided_slice %17 {offsets = [0, 64], sizes = [8, 64], strides = [1, 1]} : vector<8x192xf32> to vector<8x64xf32>
    %28 = arith.addf %26, %27 : vector<8x64xf32>
    %29 = arith.negf %28 : vector<8x64xf32>
    %30 = math.exp %29 : vector<8x64xf32>
    %cst_18 = arith.constant 1.000000e+00 : f32
    %31 = vector.broadcast %cst_18 : f32 to vector<8x64xf32>
    %32 = arith.addf %31, %30 : vector<8x64xf32>
    %33 = arith.divf %31, %32 : vector<8x64xf32>
    %34 = vector.extract_strided_slice %13 {offsets = [0, 128], sizes = [8, 64], strides = [1, 1]} : vector<8x192xf32> to vector<8x64xf32>
    %35 = vector.extract_strided_slice %17 {offsets = [0, 128], sizes = [8, 64], strides = [1, 1]} : vector<8x192xf32> to vector<8x64xf32>
    %36 = arith.mulf %25, %35 : vector<8x64xf32>
    %37 = arith.addf %34, %36 : vector<8x64xf32>
    %38 = math.tanh %37 : vector<8x64xf32>
    %cst_19 = arith.constant 1.000000e+00 : f32
    %39 = vector.broadcast %cst_19 : f32 to vector<8x64xf32>
    %40 = arith.subf %39, %33 : vector<8x64xf32>
    %41 = arith.mulf %40, %38 : vector<8x64xf32>
    %42 = arith.mulf %33, %12 : vector<8x64xf32>
    %43 = arith.addf %41, %42 : vector<8x64xf32>
    %cst_20 = arith.constant 0.000000e+00 : f32
    %44 = vector.broadcast %cst_20 : f32 to vector<8x1xf32>
    %45 = arith.cmpf ogt, %3, %44 : vector<8x1xf32>
    %46 = vector.shape_cast %45 : vector<8x1xi1> to vector<8x1xi1>
    %47 = vector.broadcast %46 : vector<8x1xi1> to vector<8x64xi1>
    %48 = arith.select %47, %43, %12 : vector<8x64xi1>, vector<8x64xf32>
    %49 = vector.extract_strided_slice %43 {offsets = [0, 0], sizes = [8, 32], strides = [1, 1]} : vector<8x64xf32> to vector<8x32xf32>
    %50 = vector.extract_strided_slice %43 {offsets = [0, 32], sizes = [8, 32], strides = [1, 1]} : vector<8x64xf32> to vector<8x32xf32>
    %51 = arith.addf %49, %50 : vector<8x32xf32>
    %cst_21 = arith.constant 5.000000e-01 : f32
    %52 = vector.broadcast %cst_21 : f32 to vector<8x32xf32>
    %53 = arith.mulf %52, %51 : vector<8x32xf32>
    %cst_22 = arith.constant 0.000000e+00 : f32
    %54 = vector.shape_cast %45 : vector<8x1xi1> to vector<8x1xi1>
    %55 = vector.broadcast %54 : vector<8x1xi1> to vector<8x32xi1>
    %56 = vector.broadcast %cst_22 : f32 to vector<8x32xf32>
    %57 = arith.select %55, %53, %56 : vector<8x32xi1>, vector<8x32xf32>
    %c0_23 = arith.constant 0 : index
    %c0_24 = arith.constant 0 : index
    %c0_25 = arith.constant 0 : index
    %58 = vector.load %arg14[%c0_23, %c0_24, %c0_25] : memref<8x8x32xf32, #tpu.memory_space<vmem>>, vector<1x8x32xf32>
    %59 = vector.shape_cast %58 : vector<1x8x32xf32> to vector<8x32xf32>
    %60 = vector.shape_cast %57 : vector<8x32xf32> to vector<1x8x32xf32>
    tpu.vector_store %arg14[%c0_23, %c0_24, %c0_25], %60 {strides = array<i32>} : memref<8x8x32xf32, #tpu.memory_space<vmem>>, vector<1x8x32xf32>,
    %61 = vector.extract_strided_slice %10 {offsets = [8, 0], sizes = [8, 192], strides = [1, 1]} : vector<64x192xf32> to vector<8x192xf32>
    %62 = arith.truncf %48 : vector<8x64xf32> to vector<8x64xbf16>
    %cst_26 = arith.constant dense<0.000000e+00> : vector<8x192xf32>
    %63 = tpu.matmul %62, %0, %cst_26 {dimension_numbers = #tpu.dot_dimension_numbers<[1], [0], [0], [1], [0, 0, 1, 1], [], []>} : vector<8x64xbf16>, vector<64x192xbf16>, vector<8x192xf32> -> vector<8x192xf32>
    %64 = vector.broadcast %1 : vector<1x192xf32> to vector<8x192xf32>
    %65 = arith.addf %63, %64 : vector<8x192xf32>
    %66 = vector.extract_strided_slice %61 {offsets = [0, 0], sizes = [8, 64], strides = [1, 1]} : vector<8x192xf32> to vector<8x64xf32>
    %67 = vector.extract_strided_slice %65 {offsets = [0, 0], sizes = [8, 64], strides = [1, 1]} : vector<8x192xf32> to vector<8x64xf32>
    %68 = arith.addf %66, %67 : vector<8x64xf32>
    %69 = arith.negf %68 : vector<8x64xf32>
    %70 = math.exp %69 : vector<8x64xf32>
    %cst_27 = arith.constant 1.000000e+00 : f32
    %71 = vector.broadcast %cst_27 : f32 to vector<8x64xf32>
    %72 = arith.addf %71, %70 : vector<8x64xf32>
    %73 = arith.divf %71, %72 : vector<8x64xf32>
    %74 = vector.extract_strided_slice %61 {offsets = [0, 64], sizes = [8, 64], strides = [1, 1]} : vector<8x192xf32> to vector<8x64xf32>
    %75 = vector.extract_strided_slice %65 {offsets = [0, 64], sizes = [8, 64], strides = [1, 1]} : vector<8x192xf32> to vector<8x64xf32>
    %76 = arith.addf %74, %75 : vector<8x64xf32>
    %77 = arith.negf %76 : vector<8x64xf32>
    %78 = math.exp %77 : vector<8x64xf32>
    %cst_28 = arith.constant 1.000000e+00 : f32
    %79 = vector.broadcast %cst_28 : f32 to vector<8x64xf32>
    %80 = arith.addf %79, %78 : vector<8x64xf32>
    %81 = arith.divf %79, %80 : vector<8x64xf32>
    %82 = vector.extract_strided_slice %61 {offsets = [0, 128], sizes = [8, 64], strides = [1, 1]} : vector<8x192xf32> to vector<8x64xf32>
    %83 = vector.extract_strided_slice %65 {offsets = [0, 128], sizes = [8, 64], strides = [1, 1]} : vector<8x192xf32> to vector<8x64xf32>
    %84 = arith.mulf %73, %83 : vector<8x64xf32>
    %85 = arith.addf %82, %84 : vector<8x64xf32>
    %86 = math.tanh %85 : vector<8x64xf32>
    %cst_29 = arith.constant 1.000000e+00 : f32
    %87 = vector.broadcast %cst_29 : f32 to vector<8x64xf32>
    %88 = arith.subf %87, %81 : vector<8x64xf32>
    %89 = arith.mulf %88, %86 : vector<8x64xf32>
    %90 = arith.mulf %81, %48 : vector<8x64xf32>
    %91 = arith.addf %89, %90 : vector<8x64xf32>
    %cst_30 = arith.constant 1.000000e+00 : f32
    %92 = vector.broadcast %cst_30 : f32 to vector<8x1xf32>
    %93 = arith.cmpf ogt, %3, %92 : vector<8x1xf32>
    %94 = vector.shape_cast %93 : vector<8x1xi1> to vector<8x1xi1>
    %95 = vector.broadcast %94 : vector<8x1xi1> to vector<8x64xi1>
    %96 = arith.select %95, %91, %48 : vector<8x64xi1>, vector<8x64xf32>
    %97 = vector.extract_strided_slice %91 {offsets = [0, 0], sizes = [8, 32], strides = [1, 1]} : vector<8x64xf32> to vector<8x32xf32>
    %98 = vector.extract_strided_slice %91 {offsets = [0, 32], sizes = [8, 32], strides = [1, 1]} : vector<8x64xf32> to vector<8x32xf32>
    %99 = arith.addf %97, %98 : vector<8x32xf32>
    %cst_31 = arith.constant 5.000000e-01 : f32
    %100 = vector.broadcast %cst_31 : f32 to vector<8x32xf32>
    %101 = arith.mulf %100, %99 : vector<8x32xf32>
    %cst_32 = arith.constant 0.000000e+00 : f32
    %102 = vector.shape_cast %93 : vector<8x1xi1> to vector<8x1xi1>
    %103 = vector.broadcast %102 : vector<8x1xi1> to vector<8x32xi1>
    %104 = vector.broadcast %cst_32 : f32 to vector<8x32xf32>
    %105 = arith.select %103, %101, %104 : vector<8x32xi1>, vector<8x32xf32>
    %c1 = arith.constant 1 : index
    %c0_33 = arith.constant 0 : index
    %c0_34 = arith.constant 0 : index
    %106 = vector.load %arg14[%c1, %c0_33, %c0_34] : memref<8x8x32xf32, #tpu.memory_space<vmem>>, vector<1x8x32xf32>
    %107 = vector.shape_cast %106 : vector<1x8x32xf32> to vector<8x32xf32>
    %108 = vector.shape_cast %105 : vector<8x32xf32> to vector<1x8x32xf32>
    tpu.vector_store %arg14[%c1, %c0_33, %c0_34], %108 {strides = array<i32>} : memref<8x8x32xf32, #tpu.memory_space<vmem>>, vector<1x8x32xf32>,
    %109 = vector.extract_strided_slice %10 {offsets = [16, 0], sizes = [8, 192], strides = [1, 1]} : vector<64x192xf32> to vector<8x192xf32>
    %110 = arith.truncf %96 : vector<8x64xf32> to vector<8x64xbf16>
    %cst_35 = arith.constant dense<0.000000e+00> : vector<8x192xf32>
    %111 = tpu.matmul %110, %0, %cst_35 {dimension_numbers = #tpu.dot_dimension_numbers<[1], [0], [0], [1], [0, 0, 1, 1], [], []>} : vector<8x64xbf16>, vector<64x192xbf16>, vector<8x192xf32> -> vector<8x192xf32>
    %112 = vector.broadcast %1 : vector<1x192xf32> to vector<8x192xf32>
    %113 = arith.addf %111, %112 : vector<8x192xf32>
    %114 = vector.extract_strided_slice %109 {offsets = [0, 0], sizes = [8, 64], strides = [1, 1]} : vector<8x192xf32> to vector<8x64xf32>
    %115 = vector.extract_strided_slice %113 {offsets = [0, 0], sizes = [8, 64], strides = [1, 1]} : vector<8x192xf32> to vector<8x64xf32>
    %116 = arith.addf %114, %115 : vector<8x64xf32>
    %117 = arith.negf %116 : vector<8x64xf32>
    %118 = math.exp %117 : vector<8x64xf32>
    %cst_36 = arith.constant 1.000000e+00 : f32
    %119 = vector.broadcast %cst_36 : f32 to vector<8x64xf32>
    %120 = arith.addf %119, %118 : vector<8x64xf32>
    %121 = arith.divf %119, %120 : vector<8x64xf32>
    %122 = vector.extract_strided_slice %109 {offsets = [0, 64], sizes = [8, 64], strides = [1, 1]} : vector<8x192xf32> to vector<8x64xf32>
    %123 = vector.extract_strided_slice %113 {offsets = [0, 64], sizes = [8, 64], strides = [1, 1]} : vector<8x192xf32> to vector<8x64xf32>
    %124 = arith.addf %122, %123 : vector<8x64xf32>
    %125 = arith.negf %124 : vector<8x64xf32>
    %126 = math.exp %125 : vector<8x64xf32>
    %cst_37 = arith.constant 1.000000e+00 : f32
    %127 = vector.broadcast %cst_37 : f32 to vector<8x64xf32>
    %128 = arith.addf %127, %126 : vector<8x64xf32>
    %129 = arith.divf %127, %128 : vector<8x64xf32>
    %130 = vector.extract_strided_slice %109 {offsets = [0, 128], sizes = [8, 64], strides = [1, 1]} : vector<8x192xf32> to vector<8x64xf32>
    %131 = vector.extract_strided_slice %113 {offsets = [0, 128], sizes = [8, 64], strides = [1, 1]} : vector<8x192xf32> to vector<8x64xf32>
    %132 = arith.mulf %121, %131 : vector<8x64xf32>
    %133 = arith.addf %130, %132 : vector<8x64xf32>
    %134 = math.tanh %133 : vector<8x64xf32>
    %cst_38 = arith.constant 1.000000e+00 : f32
    %135 = vector.broadcast %cst_38 : f32 to vector<8x64xf32>
    %136 = arith.subf %135, %129 : vector<8x64xf32>
    %137 = arith.mulf %136, %134 : vector<8x64xf32>
    %138 = arith.mulf %129, %96 : vector<8x64xf32>
    %139 = arith.addf %137, %138 : vector<8x64xf32>
    %cst_39 = arith.constant 2.000000e+00 : f32
    %140 = vector.broadcast %cst_39 : f32 to vector<8x1xf32>
    %141 = arith.cmpf ogt, %3, %140 : vector<8x1xf32>
    %142 = vector.shape_cast %141 : vector<8x1xi1> to vector<8x1xi1>
    %143 = vector.broadcast %142 : vector<8x1xi1> to vector<8x64xi1>
    %144 = arith.select %143, %139, %96 : vector<8x64xi1>, vector<8x64xf32>
    %145 = vector.extract_strided_slice %139 {offsets = [0, 0], sizes = [8, 32], strides = [1, 1]} : vector<8x64xf32> to vector<8x32xf32>
    %146 = vector.extract_strided_slice %139 {offsets = [0, 32], sizes = [8, 32], strides = [1, 1]} : vector<8x64xf32> to vector<8x32xf32>
    %147 = arith.addf %145, %146 : vector<8x32xf32>
    %cst_40 = arith.constant 5.000000e-01 : f32
    %148 = vector.broadcast %cst_40 : f32 to vector<8x32xf32>
    %149 = arith.mulf %148, %147 : vector<8x32xf32>
    %cst_41 = arith.constant 0.000000e+00 : f32
    %150 = vector.shape_cast %141 : vector<8x1xi1> to vector<8x1xi1>
    %151 = vector.broadcast %150 : vector<8x1xi1> to vector<8x32xi1>
    %152 = vector.broadcast %cst_41 : f32 to vector<8x32xf32>
    %153 = arith.select %151, %149, %152 : vector<8x32xi1>, vector<8x32xf32>
    %c2 = arith.constant 2 : index
    %c0_42 = arith.constant 0 : index
    %c0_43 = arith.constant 0 : index
    %154 = vector.load %arg14[%c2, %c0_42, %c0_43] : memref<8x8x32xf32, #tpu.memory_space<vmem>>, vector<1x8x32xf32>
    %155 = vector.shape_cast %154 : vector<1x8x32xf32> to vector<8x32xf32>
    %156 = vector.shape_cast %153 : vector<8x32xf32> to vector<1x8x32xf32>
    tpu.vector_store %arg14[%c2, %c0_42, %c0_43], %156 {strides = array<i32>} : memref<8x8x32xf32, #tpu.memory_space<vmem>>, vector<1x8x32xf32>,
    %157 = vector.extract_strided_slice %10 {offsets = [24, 0], sizes = [8, 192], strides = [1, 1]} : vector<64x192xf32> to vector<8x192xf32>
    %158 = arith.truncf %144 : vector<8x64xf32> to vector<8x64xbf16>
    %cst_44 = arith.constant dense<0.000000e+00> : vector<8x192xf32>
    %159 = tpu.matmul %158, %0, %cst_44 {dimension_numbers = #tpu.dot_dimension_numbers<[1], [0], [0], [1], [0, 0, 1, 1], [], []>} : vector<8x64xbf16>, vector<64x192xbf16>, vector<8x192xf32> -> vector<8x192xf32>
    %160 = vector.broadcast %1 : vector<1x192xf32> to vector<8x192xf32>
    %161 = arith.addf %159, %160 : vector<8x192xf32>
    %162 = vector.extract_strided_slice %157 {offsets = [0, 0], sizes = [8, 64], strides = [1, 1]} : vector<8x192xf32> to vector<8x64xf32>
    %163 = vector.extract_strided_slice %161 {offsets = [0, 0], sizes = [8, 64], strides = [1, 1]} : vector<8x192xf32> to vector<8x64xf32>
    %164 = arith.addf %162, %163 : vector<8x64xf32>
    %165 = arith.negf %164 : vector<8x64xf32>
    %166 = math.exp %165 : vector<8x64xf32>
    %cst_45 = arith.constant 1.000000e+00 : f32
    %167 = vector.broadcast %cst_45 : f32 to vector<8x64xf32>
    %168 = arith.addf %167, %166 : vector<8x64xf32>
    %169 = arith.divf %167, %168 : vector<8x64xf32>
    %170 = vector.extract_strided_slice %157 {offsets = [0, 64], sizes = [8, 64], strides = [1, 1]} : vector<8x192xf32> to vector<8x64xf32>
    %171 = vector.extract_strided_slice %161 {offsets = [0, 64], sizes = [8, 64], strides = [1, 1]} : vector<8x192xf32> to vector<8x64xf32>
    %172 = arith.addf %170, %171 : vector<8x64xf32>
    %173 = arith.negf %172 : vector<8x64xf32>
    %174 = math.exp %173 : vector<8x64xf32>
    %cst_46 = arith.constant 1.000000e+00 : f32
    %175 = vector.broadcast %cst_46 : f32 to vector<8x64xf32>
    %176 = arith.addf %175, %174 : vector<8x64xf32>
    %177 = arith.divf %175, %176 : vector<8x64xf32>
    %178 = vector.extract_strided_slice %157 {offsets = [0, 128], sizes = [8, 64], strides = [1, 1]} : vector<8x192xf32> to vector<8x64xf32>
    %179 = vector.extract_strided_slice %161 {offsets = [0, 128], sizes = [8, 64], strides = [1, 1]} : vector<8x192xf32> to vector<8x64xf32>
    %180 = arith.mulf %169, %179 : vector<8x64xf32>
    %181 = arith.addf %178, %180 : vector<8x64xf32>
    %182 = math.tanh %181 : vector<8x64xf32>
    %cst_47 = arith.constant 1.000000e+00 : f32
    %183 = vector.broadcast %cst_47 : f32 to vector<8x64xf32>
    %184 = arith.subf %183, %177 : vector<8x64xf32>
    %185 = arith.mulf %184, %182 : vector<8x64xf32>
    %186 = arith.mulf %177, %144 : vector<8x64xf32>
    %187 = arith.addf %185, %186 : vector<8x64xf32>
    %cst_48 = arith.constant 3.000000e+00 : f32
    %188 = vector.broadcast %cst_48 : f32 to vector<8x1xf32>
    %189 = arith.cmpf ogt, %3, %188 : vector<8x1xf32>
    %190 = vector.shape_cast %189 : vector<8x1xi1> to vector<8x1xi1>
    %191 = vector.broadcast %190 : vector<8x1xi1> to vector<8x64xi1>
    %192 = arith.select %191, %187, %144 : vector<8x64xi1>, vector<8x64xf32>
    %193 = vector.extract_strided_slice %187 {offsets = [0, 0], sizes = [8, 32], strides = [1, 1]} : vector<8x64xf32> to vector<8x32xf32>
    %194 = vector.extract_strided_slice %187 {offsets = [0, 32], sizes = [8, 32], strides = [1, 1]} : vector<8x64xf32> to vector<8x32xf32>
    %195 = arith.addf %193, %194 : vector<8x32xf32>
    %cst_49 = arith.constant 5.000000e-01 : f32
    %196 = vector.broadcast %cst_49 : f32 to vector<8x32xf32>
    %197 = arith.mulf %196, %195 : vector<8x32xf32>
    %cst_50 = arith.constant 0.000000e+00 : f32
    %198 = vector.shape_cast %189 : vector<8x1xi1> to vector<8x1xi1>
    %199 = vector.broadcast %198 : vector<8x1xi1> to vector<8x32xi1>
    %200 = vector.broadcast %cst_50 : f32 to vector<8x32xf32>
    %201 = arith.select %199, %197, %200 : vector<8x32xi1>, vector<8x32xf32>
    %c3 = arith.constant 3 : index
    %c0_51 = arith.constant 0 : index
    %c0_52 = arith.constant 0 : index
    %202 = vector.load %arg14[%c3, %c0_51, %c0_52] : memref<8x8x32xf32, #tpu.memory_space<vmem>>, vector<1x8x32xf32>
    %203 = vector.shape_cast %202 : vector<1x8x32xf32> to vector<8x32xf32>
    %204 = vector.shape_cast %201 : vector<8x32xf32> to vector<1x8x32xf32>
    tpu.vector_store %arg14[%c3, %c0_51, %c0_52], %204 {strides = array<i32>} : memref<8x8x32xf32, #tpu.memory_space<vmem>>, vector<1x8x32xf32>,
    %205 = vector.extract_strided_slice %10 {offsets = [32, 0], sizes = [8, 192], strides = [1, 1]} : vector<64x192xf32> to vector<8x192xf32>
    %206 = arith.truncf %192 : vector<8x64xf32> to vector<8x64xbf16>
    %cst_53 = arith.constant dense<0.000000e+00> : vector<8x192xf32>
    %207 = tpu.matmul %206, %0, %cst_53 {dimension_numbers = #tpu.dot_dimension_numbers<[1], [0], [0], [1], [0, 0, 1, 1], [], []>} : vector<8x64xbf16>, vector<64x192xbf16>, vector<8x192xf32> -> vector<8x192xf32>
    %208 = vector.broadcast %1 : vector<1x192xf32> to vector<8x192xf32>
    %209 = arith.addf %207, %208 : vector<8x192xf32>
    %210 = vector.extract_strided_slice %205 {offsets = [0, 0], sizes = [8, 64], strides = [1, 1]} : vector<8x192xf32> to vector<8x64xf32>
    %211 = vector.extract_strided_slice %209 {offsets = [0, 0], sizes = [8, 64], strides = [1, 1]} : vector<8x192xf32> to vector<8x64xf32>
    %212 = arith.addf %210, %211 : vector<8x64xf32>
    %213 = arith.negf %212 : vector<8x64xf32>
    %214 = math.exp %213 : vector<8x64xf32>
    %cst_54 = arith.constant 1.000000e+00 : f32
    %215 = vector.broadcast %cst_54 : f32 to vector<8x64xf32>
    %216 = arith.addf %215, %214 : vector<8x64xf32>
    %217 = arith.divf %215, %216 : vector<8x64xf32>
    %218 = vector.extract_strided_slice %205 {offsets = [0, 64], sizes = [8, 64], strides = [1, 1]} : vector<8x192xf32> to vector<8x64xf32>
    %219 = vector.extract_strided_slice %209 {offsets = [0, 64], sizes = [8, 64], strides = [1, 1]} : vector<8x192xf32> to vector<8x64xf32>
    %220 = arith.addf %218, %219 : vector<8x64xf32>
    %221 = arith.negf %220 : vector<8x64xf32>
    %222 = math.exp %221 : vector<8x64xf32>
    %cst_55 = arith.constant 1.000000e+00 : f32
    %223 = vector.broadcast %cst_55 : f32 to vector<8x64xf32>
    %224 = arith.addf %223, %222 : vector<8x64xf32>
    %225 = arith.divf %223, %224 : vector<8x64xf32>
    %226 = vector.extract_strided_slice %205 {offsets = [0, 128], sizes = [8, 64], strides = [1, 1]} : vector<8x192xf32> to vector<8x64xf32>
    %227 = vector.extract_strided_slice %209 {offsets = [0, 128], sizes = [8, 64], strides = [1, 1]} : vector<8x192xf32> to vector<8x64xf32>
    %228 = arith.mulf %217, %227 : vector<8x64xf32>
    %229 = arith.addf %226, %228 : vector<8x64xf32>
    %230 = math.tanh %229 : vector<8x64xf32>
    %cst_56 = arith.constant 1.000000e+00 : f32
    %231 = vector.broadcast %cst_56 : f32 to vector<8x64xf32>
    %232 = arith.subf %231, %225 : vector<8x64xf32>
    %233 = arith.mulf %232, %230 : vector<8x64xf32>
    %234 = arith.mulf %225, %192 : vector<8x64xf32>
    %235 = arith.addf %233, %234 : vector<8x64xf32>
    %cst_57 = arith.constant 4.000000e+00 : f32
    %236 = vector.broadcast %cst_57 : f32 to vector<8x1xf32>
    %237 = arith.cmpf ogt, %3, %236 : vector<8x1xf32>
    %238 = vector.shape_cast %237 : vector<8x1xi1> to vector<8x1xi1>
    %239 = vector.broadcast %238 : vector<8x1xi1> to vector<8x64xi1>
    %240 = arith.select %239, %235, %192 : vector<8x64xi1>, vector<8x64xf32>
    %241 = vector.extract_strided_slice %235 {offsets = [0, 0], sizes = [8, 32], strides = [1, 1]} : vector<8x64xf32> to vector<8x32xf32>
    %242 = vector.extract_strided_slice %235 {offsets = [0, 32], sizes = [8, 32], strides = [1, 1]} : vector<8x64xf32> to vector<8x32xf32>
    %243 = arith.addf %241, %242 : vector<8x32xf32>
    %cst_58 = arith.constant 5.000000e-01 : f32
    %244 = vector.broadcast %cst_58 : f32 to vector<8x32xf32>
    %245 = arith.mulf %244, %243 : vector<8x32xf32>
    %cst_59 = arith.constant 0.000000e+00 : f32
    %246 = vector.shape_cast %237 : vector<8x1xi1> to vector<8x1xi1>
    %247 = vector.broadcast %246 : vector<8x1xi1> to vector<8x32xi1>
    %248 = vector.broadcast %cst_59 : f32 to vector<8x32xf32>
    %249 = arith.select %247, %245, %248 : vector<8x32xi1>, vector<8x32xf32>
    %c4 = arith.constant 4 : index
    %c0_60 = arith.constant 0 : index
    %c0_61 = arith.constant 0 : index
    %250 = vector.load %arg14[%c4, %c0_60, %c0_61] : memref<8x8x32xf32, #tpu.memory_space<vmem>>, vector<1x8x32xf32>
    %251 = vector.shape_cast %250 : vector<1x8x32xf32> to vector<8x32xf32>
    %252 = vector.shape_cast %249 : vector<8x32xf32> to vector<1x8x32xf32>
    tpu.vector_store %arg14[%c4, %c0_60, %c0_61], %252 {strides = array<i32>} : memref<8x8x32xf32, #tpu.memory_space<vmem>>, vector<1x8x32xf32>,
    %253 = vector.extract_strided_slice %10 {offsets = [40, 0], sizes = [8, 192], strides = [1, 1]} : vector<64x192xf32> to vector<8x192xf32>
    %254 = arith.truncf %240 : vector<8x64xf32> to vector<8x64xbf16>
    %cst_62 = arith.constant dense<0.000000e+00> : vector<8x192xf32>
    %255 = tpu.matmul %254, %0, %cst_62 {dimension_numbers = #tpu.dot_dimension_numbers<[1], [0], [0], [1], [0, 0, 1, 1], [], []>} : vector<8x64xbf16>, vector<64x192xbf16>, vector<8x192xf32> -> vector<8x192xf32>
    %256 = vector.broadcast %1 : vector<1x192xf32> to vector<8x192xf32>
    %257 = arith.addf %255, %256 : vector<8x192xf32>
    %258 = vector.extract_strided_slice %253 {offsets = [0, 0], sizes = [8, 64], strides = [1, 1]} : vector<8x192xf32> to vector<8x64xf32>
    %259 = vector.extract_strided_slice %257 {offsets = [0, 0], sizes = [8, 64], strides = [1, 1]} : vector<8x192xf32> to vector<8x64xf32>
    %260 = arith.addf %258, %259 : vector<8x64xf32>
    %261 = arith.negf %260 : vector<8x64xf32>
    %262 = math.exp %261 : vector<8x64xf32>
    %cst_63 = arith.constant 1.000000e+00 : f32
    %263 = vector.broadcast %cst_63 : f32 to vector<8x64xf32>
    %264 = arith.addf %263, %262 : vector<8x64xf32>
    %265 = arith.divf %263, %264 : vector<8x64xf32>
    %266 = vector.extract_strided_slice %253 {offsets = [0, 64], sizes = [8, 64], strides = [1, 1]} : vector<8x192xf32> to vector<8x64xf32>
    %267 = vector.extract_strided_slice %257 {offsets = [0, 64], sizes = [8, 64], strides = [1, 1]} : vector<8x192xf32> to vector<8x64xf32>
    %268 = arith.addf %266, %267 : vector<8x64xf32>
    %269 = arith.negf %268 : vector<8x64xf32>
    %270 = math.exp %269 : vector<8x64xf32>
    %cst_64 = arith.constant 1.000000e+00 : f32
    %271 = vector.broadcast %cst_64 : f32 to vector<8x64xf32>
    %272 = arith.addf %271, %270 : vector<8x64xf32>
    %273 = arith.divf %271, %272 : vector<8x64xf32>
    %274 = vector.extract_strided_slice %253 {offsets = [0, 128], sizes = [8, 64], strides = [1, 1]} : vector<8x192xf32> to vector<8x64xf32>
    %275 = vector.extract_strided_slice %257 {offsets = [0, 128], sizes = [8, 64], strides = [1, 1]} : vector<8x192xf32> to vector<8x64xf32>
    %276 = arith.mulf %265, %275 : vector<8x64xf32>
    %277 = arith.addf %274, %276 : vector<8x64xf32>
    %278 = math.tanh %277 : vector<8x64xf32>
    %cst_65 = arith.constant 1.000000e+00 : f32
    %279 = vector.broadcast %cst_65 : f32 to vector<8x64xf32>
    %280 = arith.subf %279, %273 : vector<8x64xf32>
    %281 = arith.mulf %280, %278 : vector<8x64xf32>
    %282 = arith.mulf %273, %240 : vector<8x64xf32>
    %283 = arith.addf %281, %282 : vector<8x64xf32>
    %cst_66 = arith.constant 5.000000e+00 : f32
    %284 = vector.broadcast %cst_66 : f32 to vector<8x1xf32>
    %285 = arith.cmpf ogt, %3, %284 : vector<8x1xf32>
    %286 = vector.shape_cast %285 : vector<8x1xi1> to vector<8x1xi1>
    %287 = vector.broadcast %286 : vector<8x1xi1> to vector<8x64xi1>
    %288 = arith.select %287, %283, %240 : vector<8x64xi1>, vector<8x64xf32>
    %289 = vector.extract_strided_slice %283 {offsets = [0, 0], sizes = [8, 32], strides = [1, 1]} : vector<8x64xf32> to vector<8x32xf32>
    %290 = vector.extract_strided_slice %283 {offsets = [0, 32], sizes = [8, 32], strides = [1, 1]} : vector<8x64xf32> to vector<8x32xf32>
    %291 = arith.addf %289, %290 : vector<8x32xf32>
    %cst_67 = arith.constant 5.000000e-01 : f32
    %292 = vector.broadcast %cst_67 : f32 to vector<8x32xf32>
    %293 = arith.mulf %292, %291 : vector<8x32xf32>
    %cst_68 = arith.constant 0.000000e+00 : f32
    %294 = vector.shape_cast %285 : vector<8x1xi1> to vector<8x1xi1>
    %295 = vector.broadcast %294 : vector<8x1xi1> to vector<8x32xi1>
    %296 = vector.broadcast %cst_68 : f32 to vector<8x32xf32>
    %297 = arith.select %295, %293, %296 : vector<8x32xi1>, vector<8x32xf32>
    %c5 = arith.constant 5 : index
    %c0_69 = arith.constant 0 : index
    %c0_70 = arith.constant 0 : index
    %298 = vector.load %arg14[%c5, %c0_69, %c0_70] : memref<8x8x32xf32, #tpu.memory_space<vmem>>, vector<1x8x32xf32>
    %299 = vector.shape_cast %298 : vector<1x8x32xf32> to vector<8x32xf32>
    %300 = vector.shape_cast %297 : vector<8x32xf32> to vector<1x8x32xf32>
    tpu.vector_store %arg14[%c5, %c0_69, %c0_70], %300 {strides = array<i32>} : memref<8x8x32xf32, #tpu.memory_space<vmem>>, vector<1x8x32xf32>,
    %301 = vector.extract_strided_slice %10 {offsets = [48, 0], sizes = [8, 192], strides = [1, 1]} : vector<64x192xf32> to vector<8x192xf32>
    %302 = arith.truncf %288 : vector<8x64xf32> to vector<8x64xbf16>
    %cst_71 = arith.constant dense<0.000000e+00> : vector<8x192xf32>
    %303 = tpu.matmul %302, %0, %cst_71 {dimension_numbers = #tpu.dot_dimension_numbers<[1], [0], [0], [1], [0, 0, 1, 1], [], []>} : vector<8x64xbf16>, vector<64x192xbf16>, vector<8x192xf32> -> vector<8x192xf32>
    %304 = vector.broadcast %1 : vector<1x192xf32> to vector<8x192xf32>
    %305 = arith.addf %303, %304 : vector<8x192xf32>
    %306 = vector.extract_strided_slice %301 {offsets = [0, 0], sizes = [8, 64], strides = [1, 1]} : vector<8x192xf32> to vector<8x64xf32>
    %307 = vector.extract_strided_slice %305 {offsets = [0, 0], sizes = [8, 64], strides = [1, 1]} : vector<8x192xf32> to vector<8x64xf32>
    %308 = arith.addf %306, %307 : vector<8x64xf32>
    %309 = arith.negf %308 : vector<8x64xf32>
    %310 = math.exp %309 : vector<8x64xf32>
    %cst_72 = arith.constant 1.000000e+00 : f32
    %311 = vector.broadcast %cst_72 : f32 to vector<8x64xf32>
    %312 = arith.addf %311, %310 : vector<8x64xf32>
    %313 = arith.divf %311, %312 : vector<8x64xf32>
    %314 = vector.extract_strided_slice %301 {offsets = [0, 64], sizes = [8, 64], strides = [1, 1]} : vector<8x192xf32> to vector<8x64xf32>
    %315 = vector.extract_strided_slice %305 {offsets = [0, 64], sizes = [8, 64], strides = [1, 1]} : vector<8x192xf32> to vector<8x64xf32>
    %316 = arith.addf %314, %315 : vector<8x64xf32>
    %317 = arith.negf %316 : vector<8x64xf32>
    %318 = math.exp %317 : vector<8x64xf32>
    %cst_73 = arith.constant 1.000000e+00 : f32
    %319 = vector.broadcast %cst_73 : f32 to vector<8x64xf32>
    %320 = arith.addf %319, %318 : vector<8x64xf32>
    %321 = arith.divf %319, %320 : vector<8x64xf32>
    %322 = vector.extract_strided_slice %301 {offsets = [0, 128], sizes = [8, 64], strides = [1, 1]} : vector<8x192xf32> to vector<8x64xf32>
    %323 = vector.extract_strided_slice %305 {offsets = [0, 128], sizes = [8, 64], strides = [1, 1]} : vector<8x192xf32> to vector<8x64xf32>
    %324 = arith.mulf %313, %323 : vector<8x64xf32>
    %325 = arith.addf %322, %324 : vector<8x64xf32>
    %326 = math.tanh %325 : vector<8x64xf32>
    %cst_74 = arith.constant 1.000000e+00 : f32
    %327 = vector.broadcast %cst_74 : f32 to vector<8x64xf32>
    %328 = arith.subf %327, %321 : vector<8x64xf32>
    %329 = arith.mulf %328, %326 : vector<8x64xf32>
    %330 = arith.mulf %321, %288 : vector<8x64xf32>
    %331 = arith.addf %329, %330 : vector<8x64xf32>
    %cst_75 = arith.constant 6.000000e+00 : f32
    %332 = vector.broadcast %cst_75 : f32 to vector<8x1xf32>
    %333 = arith.cmpf ogt, %3, %332 : vector<8x1xf32>
    %334 = vector.shape_cast %333 : vector<8x1xi1> to vector<8x1xi1>
    %335 = vector.broadcast %334 : vector<8x1xi1> to vector<8x64xi1>
    %336 = arith.select %335, %331, %288 : vector<8x64xi1>, vector<8x64xf32>
    %337 = vector.extract_strided_slice %331 {offsets = [0, 0], sizes = [8, 32], strides = [1, 1]} : vector<8x64xf32> to vector<8x32xf32>
    %338 = vector.extract_strided_slice %331 {offsets = [0, 32], sizes = [8, 32], strides = [1, 1]} : vector<8x64xf32> to vector<8x32xf32>
    %339 = arith.addf %337, %338 : vector<8x32xf32>
    %cst_76 = arith.constant 5.000000e-01 : f32
    %340 = vector.broadcast %cst_76 : f32 to vector<8x32xf32>
    %341 = arith.mulf %340, %339 : vector<8x32xf32>
    %cst_77 = arith.constant 0.000000e+00 : f32
    %342 = vector.shape_cast %333 : vector<8x1xi1> to vector<8x1xi1>
    %343 = vector.broadcast %342 : vector<8x1xi1> to vector<8x32xi1>
    %344 = vector.broadcast %cst_77 : f32 to vector<8x32xf32>
    %345 = arith.select %343, %341, %344 : vector<8x32xi1>, vector<8x32xf32>
    %c6 = arith.constant 6 : index
    %c0_78 = arith.constant 0 : index
    %c0_79 = arith.constant 0 : index
    %346 = vector.load %arg14[%c6, %c0_78, %c0_79] : memref<8x8x32xf32, #tpu.memory_space<vmem>>, vector<1x8x32xf32>
    %347 = vector.shape_cast %346 : vector<1x8x32xf32> to vector<8x32xf32>
    %348 = vector.shape_cast %345 : vector<8x32xf32> to vector<1x8x32xf32>
    tpu.vector_store %arg14[%c6, %c0_78, %c0_79], %348 {strides = array<i32>} : memref<8x8x32xf32, #tpu.memory_space<vmem>>, vector<1x8x32xf32>,
    %349 = vector.extract_strided_slice %10 {offsets = [56, 0], sizes = [8, 192], strides = [1, 1]} : vector<64x192xf32> to vector<8x192xf32>
    %350 = arith.truncf %336 : vector<8x64xf32> to vector<8x64xbf16>
    %cst_80 = arith.constant dense<0.000000e+00> : vector<8x192xf32>
    %351 = tpu.matmul %350, %0, %cst_80 {dimension_numbers = #tpu.dot_dimension_numbers<[1], [0], [0], [1], [0, 0, 1, 1], [], []>} : vector<8x64xbf16>, vector<64x192xbf16>, vector<8x192xf32> -> vector<8x192xf32>
    %352 = vector.broadcast %1 : vector<1x192xf32> to vector<8x192xf32>
    %353 = arith.addf %351, %352 : vector<8x192xf32>
    %354 = vector.extract_strided_slice %349 {offsets = [0, 0], sizes = [8, 64], strides = [1, 1]} : vector<8x192xf32> to vector<8x64xf32>
    %355 = vector.extract_strided_slice %353 {offsets = [0, 0], sizes = [8, 64], strides = [1, 1]} : vector<8x192xf32> to vector<8x64xf32>
    %356 = arith.addf %354, %355 : vector<8x64xf32>
    %357 = arith.negf %356 : vector<8x64xf32>
    %358 = math.exp %357 : vector<8x64xf32>
    %cst_81 = arith.constant 1.000000e+00 : f32
    %359 = vector.broadcast %cst_81 : f32 to vector<8x64xf32>
    %360 = arith.addf %359, %358 : vector<8x64xf32>
    %361 = arith.divf %359, %360 : vector<8x64xf32>
    %362 = vector.extract_strided_slice %349 {offsets = [0, 64], sizes = [8, 64], strides = [1, 1]} : vector<8x192xf32> to vector<8x64xf32>
    %363 = vector.extract_strided_slice %353 {offsets = [0, 64], sizes = [8, 64], strides = [1, 1]} : vector<8x192xf32> to vector<8x64xf32>
    %364 = arith.addf %362, %363 : vector<8x64xf32>
    %365 = arith.negf %364 : vector<8x64xf32>
    %366 = math.exp %365 : vector<8x64xf32>
    %cst_82 = arith.constant 1.000000e+00 : f32
    %367 = vector.broadcast %cst_82 : f32 to vector<8x64xf32>
    %368 = arith.addf %367, %366 : vector<8x64xf32>
    %369 = arith.divf %367, %368 : vector<8x64xf32>
    %370 = vector.extract_strided_slice %349 {offsets = [0, 128], sizes = [8, 64], strides = [1, 1]} : vector<8x192xf32> to vector<8x64xf32>
    %371 = vector.extract_strided_slice %353 {offsets = [0, 128], sizes = [8, 64], strides = [1, 1]} : vector<8x192xf32> to vector<8x64xf32>
    %372 = arith.mulf %361, %371 : vector<8x64xf32>
    %373 = arith.addf %370, %372 : vector<8x64xf32>
    %374 = math.tanh %373 : vector<8x64xf32>
    %cst_83 = arith.constant 1.000000e+00 : f32
    %375 = vector.broadcast %cst_83 : f32 to vector<8x64xf32>
    %376 = arith.subf %375, %369 : vector<8x64xf32>
    %377 = arith.mulf %376, %374 : vector<8x64xf32>
    %378 = arith.mulf %369, %336 : vector<8x64xf32>
    %379 = arith.addf %377, %378 : vector<8x64xf32>
    %cst_84 = arith.constant 7.000000e+00 : f32
    %380 = vector.broadcast %cst_84 : f32 to vector<8x1xf32>
    %381 = arith.cmpf ogt, %3, %380 : vector<8x1xf32>
    %382 = vector.extract_strided_slice %379 {offsets = [0, 0], sizes = [8, 32], strides = [1, 1]} : vector<8x64xf32> to vector<8x32xf32>
    %383 = vector.extract_strided_slice %379 {offsets = [0, 32], sizes = [8, 32], strides = [1, 1]} : vector<8x64xf32> to vector<8x32xf32>
    %384 = arith.addf %382, %383 : vector<8x32xf32>
    %cst_85 = arith.constant 5.000000e-01 : f32
    %385 = vector.broadcast %cst_85 : f32 to vector<8x32xf32>
    %386 = arith.mulf %385, %384 : vector<8x32xf32>
    %cst_86 = arith.constant 0.000000e+00 : f32
    %387 = vector.shape_cast %381 : vector<8x1xi1> to vector<8x1xi1>
    %388 = vector.broadcast %387 : vector<8x1xi1> to vector<8x32xi1>
    %389 = vector.broadcast %cst_86 : f32 to vector<8x32xf32>
    %390 = arith.select %388, %386, %389 : vector<8x32xi1>, vector<8x32xf32>
    %c7 = arith.constant 7 : index
    %c0_87 = arith.constant 0 : index
    %c0_88 = arith.constant 0 : index
    %391 = vector.load %arg14[%c7, %c0_87, %c0_88] : memref<8x8x32xf32, #tpu.memory_space<vmem>>, vector<1x8x32xf32>
    %392 = vector.shape_cast %391 : vector<1x8x32xf32> to vector<8x32xf32>
    %393 = vector.shape_cast %390 : vector<8x32xf32> to vector<1x8x32xf32>
    tpu.vector_store %arg14[%c7, %c0_87, %c0_88], %393 {strides = array<i32>} : memref<8x8x32xf32, #tpu.memory_space<vmem>>, vector<1x8x32xf32>,
    %c0_89 = arith.constant 0 : index
    %c0_90 = arith.constant 0 : index
    %c0_91 = arith.constant 0 : index
    %394 = vector.load %arg14[%c0_89, %c0_90, %c0_91] : memref<8x8x32xf32, #tpu.memory_space<vmem>>, vector<8x8x32xf32>
    %c0_92 = arith.constant 0 : index
    %c0_93 = arith.constant 0 : index
    %395 = vector.load %arg9[%c0_92, %c0_93] : memref<1x32xf32, #tpu.memory_space<vmem>>, vector<1x32xf32>
    %396 = vector.shape_cast %395 : vector<1x32xf32> to vector<1x1x32xf32>
    %397 = math.tanh %394 : vector<8x8x32xf32>
    %398 = vector.broadcast %396 : vector<1x1x32xf32> to vector<8x8x32xf32>
    %399 = arith.mulf %397, %398 : vector<8x8x32xf32>
    %cst_94 = arith.constant dense<0.000000e+00> : vector<8x8xf32>
    %400 = vector.multi_reduction <add>, %399, %cst_94 [2] : vector<8x8x32xf32> to vector<8x8xf32>
    %c0_95 = arith.constant 0 : index
    %c0_96 = arith.constant 0 : index
    %401 = memref.load %arg10[%c0_95, %c0_96] : memref<1x1xf32, #tpu.memory_space<smem>>
    %402 = vector.broadcast %401 : f32 to vector<8x8xf32>
    %403 = arith.addf %400, %402 : vector<8x8xf32>
    %c0_97 = arith.constant 0 : index
    %c0_98 = arith.constant 0 : index
    %c0_99 = arith.constant 0 : index
    %404 = vector.load %arg3[%c0_97, %c0_98, %c0_99] : memref<1x8x8xf32, #tpu.memory_space<vmem>>, vector<1x8x8xf32>
    %405 = vector.shape_cast %404 : vector<1x8x8xf32> to vector<8x8xf32>
    %cst_100 = arith.constant 0.000000e+00 : f32
    %406 = vector.broadcast %cst_100 : f32 to vector<8x8xf32>
    %407 = arith.cmpf ogt, %405, %406 : vector<8x8xf32>
    %cst_101 = arith.constant -4.2949673E+9 : f32
    %408 = vector.broadcast %cst_101 : f32 to vector<8x8xf32>
    %409 = arith.select %407, %403, %408 : vector<8x8xi1>, vector<8x8xf32>
    %cst_102 = arith.constant dense<0xFF800000> : vector<8xf32>
    %410 = vector.multi_reduction <maximumf>, %409, %cst_102 [0] : vector<8x8xf32> to vector<8xf32>
    %411 = vector.shape_cast %410 : vector<8xf32> to vector<1x8xf32>
    %412 = vector.broadcast %411 : vector<1x8xf32> to vector<8x8xf32>
    %413 = arith.subf %409, %412 : vector<8x8xf32>
    %414 = math.exp %413 : vector<8x8xf32>
    %cst_103 = arith.constant dense<0.000000e+00> : vector<8xf32>
    %415 = vector.multi_reduction <add>, %414, %cst_103 [0] : vector<8x8xf32> to vector<8xf32>
    %416 = vector.shape_cast %415 : vector<8xf32> to vector<1x8xf32>
    %417 = tpu.reciprocal %416 {approx = true} : vector<1x8xf32> -> vector<1x8xf32>
    %418 = vector.broadcast %417 : vector<1x8xf32> to vector<8x8xf32>
    %419 = arith.mulf %414, %418 : vector<8x8xf32>
    %420 = vector.shape_cast %419 : vector<8x8xf32> to vector<8x8x1xf32>
    %421 = vector.broadcast %420 : vector<8x8x1xf32> to vector<8x8x32xf32>
    %422 = arith.mulf %394, %421 : vector<8x8x32xf32>
    %cst_104 = arith.constant dense<0.000000e+00> : vector<8x32xf32>
    %423 = vector.multi_reduction <add>, %422, %cst_104 [0] : vector<8x8x32xf32> to vector<8x32xf32>
    %424 = arith.truncf %423 : vector<8x32xf32> to vector<8x32xbf16>
    %c0_105 = arith.constant 0 : index
    %c0_106 = arith.constant 0 : index
    %425 = vector.load %arg11[%c0_105, %c0_106] : memref<32x128xbf16, #tpu.memory_space<vmem>>, vector<32x128xbf16>
    %cst_107 = arith.constant dense<0.000000e+00> : vector<8x128xf32>
    %426 = tpu.matmul %424, %425, %cst_107 {dimension_numbers = #tpu.dot_dimension_numbers<[1], [0], [0], [1], [0, 0, 1, 1], [], []>} : vector<8x32xbf16>, vector<32x128xbf16>, vector<8x128xf32> -> vector<8x128xf32>
    %c0_108 = arith.constant 0 : index
    %c0_109 = arith.constant 0 : index
    %427 = vector.load %arg12[%c0_108, %c0_109] : memref<1x128xf32, #tpu.memory_space<vmem>>, vector<1x128xf32>
    %428 = vector.broadcast %427 : vector<1x128xf32> to vector<8x128xf32>
    %429 = arith.addf %426, %428 : vector<8x128xf32>
    %c0_110 = arith.constant 0 : index
    %c0_111 = arith.constant 0 : index
    %430 = vector.load %arg13[%c0_110, %c0_111] : memref<8x128xf32, #tpu.memory_space<vmem>>, vector<8x128xf32>
    tpu.vector_store %arg13[%c0_110, %c0_111], %429 {strides = array<i32>} : memref<8x128xf32, #tpu.memory_space<vmem>>, vector<8x128xf32>,
    return
  }
  func.func @transform_0(%arg0: i32) -> (i32, i32, i32) {
    %c0_i32 = arith.constant 0 : i32
    %c0_i32_0 = arith.constant 0 : i32
    %c0_i32_1 = arith.constant 0 : i32
    return %arg0, %c0_i32, %c0_i32_0 : i32, i32, i32
  }
  func.func @transform_1(%arg0: i32) -> (i32, i32, i32) {
    %c0_i32 = arith.constant 0 : i32
    %c0_i32_0 = arith.constant 0 : i32
    %c0_i32_1 = arith.constant 0 : i32
    return %arg0, %c0_i32, %c0_i32_0 : i32, i32, i32
  }
  func.func @transform_2(%arg0: i32) -> (i32, i32, i32) {
    %c0_i32 = arith.constant 0 : i32
    %c0_i32_0 = arith.constant 0 : i32
    %c0_i32_1 = arith.constant 0 : i32
    return %arg0, %c0_i32, %c0_i32_0 : i32, i32, i32
  }
  func.func @transform_3(%arg0: i32) -> (i32, i32, i32) {
    %c0_i32 = arith.constant 0 : i32
    %c0_i32_0 = arith.constant 0 : i32
    %c0_i32_1 = arith.constant 0 : i32
    return %arg0, %c0_i32, %c0_i32_0 : i32, i32, i32
  }
  func.func @transform_4(%arg0: i32) -> (i32, i32) {
    %c0_i32 = arith.constant 0 : i32
    %c0_i32_0 = arith.constant 0 : i32
    %c0_i32_1 = arith.constant 0 : i32
    return %c0_i32, %c0_i32_0 : i32, i32
  }
  func.func @transform_5(%arg0: i32) -> (i32, i32) {
    %c0_i32 = arith.constant 0 : i32
    %c0_i32_0 = arith.constant 0 : i32
    %c0_i32_1 = arith.constant 0 : i32
    return %c0_i32, %c0_i32_0 : i32, i32
  }
  func.func @transform_6(%arg0: i32) -> (i32, i32) {
    %c0_i32 = arith.constant 0 : i32
    %c0_i32_0 = arith.constant 0 : i32
    %c0_i32_1 = arith.constant 0 : i32
    return %c0_i32, %c0_i32_0 : i32, i32
  }
  func.func @transform_7(%arg0: i32) -> (i32, i32) {
    %c0_i32 = arith.constant 0 : i32
    %c0_i32_0 = arith.constant 0 : i32
    %c0_i32_1 = arith.constant 0 : i32
    return %c0_i32, %c0_i32_0 : i32, i32
  }
  func.func @transform_8(%arg0: i32) -> (i32, i32) {
    %c0_i32 = arith.constant 0 : i32
    %c0_i32_0 = arith.constant 0 : i32
    %c0_i32_1 = arith.constant 0 : i32
    return %c0_i32, %c0_i32_0 : i32, i32
  }
  func.func @transform_9(%arg0: i32) -> (i32, i32) {
    %c0_i32 = arith.constant 0 : i32
    %c0_i32_0 = arith.constant 0 : i32
    %c0_i32_1 = arith.constant 0 : i32
    return %c0_i32, %c0_i32_0 : i32, i32
  }
  func.func @transform_10(%arg0: i32) -> (i32, i32) {
    %c0_i32 = arith.constant 0 : i32
    %c0_i32_0 = arith.constant 0 : i32
    %c0_i32_1 = arith.constant 0 : i32
    return %c0_i32, %c0_i32_0 : i32, i32
  }
  func.func @transform_11(%arg0: i32) -> (i32, i32) {
    %c0_i32 = arith.constant 0 : i32
    %c0_i32_0 = arith.constant 0 : i32
    %c0_i32_1 = arith.constant 0 : i32
    return %c0_i32, %c0_i32_0 : i32, i32
  }
  func.func @transform_12(%arg0: i32) -> (i32, i32) {
    %c0_i32 = arith.constant 0 : i32
    %c0_i32_0 = arith.constant 0 : i32
    return %arg0, %c0_i32 : i32, i32
  }
}

</mosaic_0001>

<llo_original>
// kernel: tpu_custom_call.1
$region0: #{tpu_custom_call.1}
  #allocation0 [shape = 'u32[]', space=smem, size = 0x4, offset = 0x4, fixed_abs, tag = 'smem constant byte address 0x4 - core index']
  #allocation1 [shape = 'u32[72,128]{1,0:T(1,128)}', space=vmem, size = 0x9000, scoped, tag = 'internal scratch']
  #allocation2 [shape = 'f32[8,8,32]{2,1,0:T(8,128)}', space=vmem, size = 0x8000, scoped, tag = 'scratch operand']
  #allocation3 [shape = 'f32[1,1]{1,0:T(1,128)S(6)}', space=smem, size = 0x200, scoped, tag = 'scoped memory for tpu_custom_call.1']
  %s0 = inlined_call_operand.hbm [shape: bf16[1,64,64], index: 0, kind: input, shape index: {}]
  %s1 = inlined_call_operand.vmem [shape: f32[1,8,1], index: 1, kind: input, shape index: {}]
  %s2 = inlined_call_operand.hbm [shape: f32[1,8,8], index: 2, kind: input, shape index: {}]
  %s3 = inlined_call_operand.hbm [shape: f32[1,8,64], index: 3, kind: input, shape index: {}]
  %s4 = inlined_call_operand.hbm [shape: bf16[64,192], index: 4, kind: input, shape index: {}]
  %s5 = inlined_call_operand.hbm [shape: bf16[64,192], index: 5, kind: input, shape index: {}]
  %s6 = inlined_call_operand.vmem [shape: f32[1,192], index: 6, kind: input, shape index: {}]
  %s7 = inlined_call_operand.hbm [shape: f32[1,192], index: 7, kind: input, shape index: {}]
  %s8 = inlined_call_operand.vmem [shape: f32[1,32], index: 8, kind: input, shape index: {}]
  %s9 = inlined_call_operand.<no memory space> [shape: f32[1,1], index: 9, kind: input, shape index: {}]
  %s10 = inlined_call_operand.vmem [shape: bf16[32,128], index: 10, kind: input, shape index: {}]
  %s11 = inlined_call_operand.vmem [shape: f32[1,128], index: 11, kind: input, shape index: {}]
  %s12 = inlined_call_operand.hbm [shape: f32[8,128], index: 12, kind: output, shape index: {}]
  %s13 = sld [smem:[#allocation0]]
  $region82: #{tpu_custom_call.1} parent=0
    _
  %s15 = ssub.s32 1, %s13
  %s16 = scalar_select 0, %s15, %s13
  %17 = sst [smem:[#allocation3]] %s9
  $region1: #{tpu_custom_call.1} parent=0
    #allocation4 [shape = 'u8[16384]{0}', space=vmem, size = 0x4000, scoped, tag = 'input window, operand 0, single buffered']
    #allocation5 [shape = 's32[1]{0}', space=sflag, size = 0x4, scoped, tag = 'scoped memory for tpu_custom_call.1']
    #allocation6 [shape = 's32[1]{0}', space=sflag, size = 0x4, scoped, tag = 'scoped memory for tpu_custom_call.1']
    #allocation7 [shape = 'u8[4096]{0}', space=vmem, size = 0x1000, scoped, tag = 'input window, operand 2, single buffered']
    #allocation8 [shape = 's32[1]{0}', space=sflag, size = 0x4, scoped, tag = 'scoped memory for tpu_custom_call.1']
    #allocation9 [shape = 'u8[4096]{0}', space=vmem, size = 0x1000, scoped, tag = 'input window, operand 3, single buffered']
    #allocation10 [shape = 'u8[32768]{0}', space=vmem, size = 0x8000, scoped, tag = 'input window, operand 4, single buffered']
    #allocation11 [shape = 's32[1]{0}', space=sflag, size = 0x4, scoped, tag = 'scoped memory for tpu_custom_call.1']
    #allocation12 [shape = 'u8[32768]{0}', space=vmem, size = 0x8000, scoped, tag = 'input window, operand 5, single buffered']
    #allocation13 [shape = 'u8[1024]{0}', space=vmem, size = 0x400, scoped, tag = 'input window, operand 7, single buffered']
    #allocation14 [shape = 's32[1]{0}', space=sflag, size = 0x4, scoped, tag = 'scoped memory for tpu_custom_call.1']
    #allocation15 [shape = 'u8[4096]{0}', space=vmem, size = 0x1000, scoped, tag = 'output window, operand 0, single buffered']
    %18 = vsyncpa [#allocation5], 0
    %19 = vsyncpa [#allocation8], 0
    %20 = vsyncpa [#allocation11], 0
    %21 = vsyncpa [#allocation14], 0
    %22 = vsyncpa [#allocation6], 0
    // Predicated region
    $region2: #{tpu_custom_call.1} parent=1 // pred_check
      _
    $region3: #{tpu_custom_call.1} parent=1 // pred_check_branch
      %24 = sbr.rel (0) target = $region5
    $region4: #{tpu_custom_call.1} parent=1 // pred_region
      %26 = vsyncadd [#allocation5], 0
      %s27 = sshll.u32 %s0, 4
      %s28 = int_to_ptr.hbm [resolvable:$true] %s27
      %s29 = sshll.u32 [#allocation4], 4
      %s30 = int_to_ptr.vmem [resolvable:$true] %s29
      %35 = dma.hbm_to_vmem [thread:$0]  %s28, 512, %s30, [#allocation5], 64, 64, 4
    $region5: #{tpu_custom_call.1} parent=1 // pred_fallthru
      _
    // Predicated region
    $region6: #{tpu_custom_call.1} parent=1 // pred_check
      _
    $region7: #{tpu_custom_call.1} parent=1 // pred_check_branch
      %37 = sbr.rel (0) target = $region9
    $region8: #{tpu_custom_call.1} parent=1 // pred_region
      _
    $region9: #{tpu_custom_call.1} parent=1 // pred_fallthru
      _
    // Predicated region
    $region10: #{tpu_custom_call.1} parent=1 // pred_check
      _
    $region11: #{tpu_custom_call.1} parent=1 // pred_check_branch
      %39 = sbr.rel (0) target = $region13
    $region12: #{tpu_custom_call.1} parent=1 // pred_region
      %41 = vsyncadd [#allocation8], 0
      %s43 = sshll.u32 %s2, 4
      %s44 = int_to_ptr.hbm [resolvable:$true] %s43
      %s45 = sshll.u32 [#allocation7], 4
      %s46 = int_to_ptr.vmem [resolvable:$true] %s45
      %48 = dma.hbm_to_vmem [thread:$0]  %s44, 128, %s46, [#allocation8]
    $region13: #{tpu_custom_call.1} parent=1 // pred_fallthru
      _
    // Predicated region
    $region14: #{tpu_custom_call.1} parent=1 // pred_check
      _
    $region15: #{tpu_custom_call.1} parent=1 // pred_check_branch
      %50 = sbr.rel (0) target = $region17
    $region16: #{tpu_custom_call.1} parent=1 // pred_region
      %52 = vsyncadd [#allocation8], 0
      %s54 = sshll.u32 %s3, 4
      %s55 = int_to_ptr.hbm [resolvable:$true] %s54
      %s56 = sshll.u32 [#allocation9], 4
      %s57 = int_to_ptr.vmem [resolvable:$true] %s56
      %59 = dma.hbm_to_vmem [thread:$0]  %s55, 128, %s57, [#allocation8]
    $region17: #{tpu_custom_call.1} parent=1 // pred_fallthru
      _
    // Predicated region
    $region18: #{tpu_custom_call.1} parent=1 // pred_check
      _
    $region19: #{tpu_custom_call.1} parent=1 // pred_check_branch
      %61 = sbr.rel (0) target = $region21
    $region20: #{tpu_custom_call.1} parent=1 // pred_region
      %63 = vsyncadd [#allocation11], 0
      %s64 = sshll.u32 %s4, 4
      %s65 = int_to_ptr.hbm [resolvable:$true] %s64
      %s66 = sshll.u32 [#allocation10], 4
      %s67 = int_to_ptr.vmem [resolvable:$true] %s66
      %72 = dma.hbm_to_vmem [thread:$0]  %s65, 1024, %s67, [#allocation11], 128, 128, 8
    $region21: #{tpu_custom_call.1} parent=1 // pred_fallthru
      _
    // Predicated region
    $region22: #{tpu_custom_call.1} parent=1 // pred_check
      _
    $region23: #{tpu_custom_call.1} parent=1 // pred_check_branch
      %74 = sbr.rel (0) target = $region25
    $region24: #{tpu_custom_call.1} parent=1 // pred_region
      %76 = vsyncadd [#allocation11], 0
      %s77 = sshll.u32 %s5, 4
      %s78 = int_to_ptr.hbm [resolvable:$true] %s77
      %s79 = sshll.u32 [#allocation12], 4
      %s80 = int_to_ptr.vmem [resolvable:$true] %s79
      %85 = dma.hbm_to_vmem [thread:$0]  %s78, 1024, %s80, [#allocation11], 128, 128, 8
    $region25: #{tpu_custom_call.1} parent=1 // pred_fallthru
      _
    // Predicated region
    $region26: #{tpu_custom_call.1} parent=1 // pred_check
      _
    $region27: #{tpu_custom_call.1} parent=1 // pred_check_branch
      %87 = sbr.rel (0) target = $region29
    $region28: #{tpu_custom_call.1} parent=1 // pred_region
      _
    $region29: #{tpu_custom_call.1} parent=1 // pred_fallthru
      _
    // Predicated region
    $region30: #{tpu_custom_call.1} parent=1 // pred_check
      _
    $region31: #{tpu_custom_call.1} parent=1 // pred_check_branch
      %89 = sbr.rel (0) target = $region33
    $region32: #{tpu_custom_call.1} parent=1 // pred_region
      %91 = vsyncadd [#allocation14], 0
      %s93 = sshll.u32 %s7, 4
      %s94 = int_to_ptr.hbm [resolvable:$true] %s93
      %s95 = sshll.u32 [#allocation13], 4
      %s96 = int_to_ptr.vmem [resolvable:$true] %s95
      %98 = dma.hbm_to_vmem [thread:$0]  %s94, 32, %s96, [#allocation14]
    $region33: #{tpu_custom_call.1} parent=1 // pred_fallthru
      _
    // Predicated region
    $region34: #{tpu_custom_call.1} parent=1 // pred_check
      _
    $region35: #{tpu_custom_call.1} parent=1 // pred_check_branch
      %100 = sbr.rel (0) target = $region37
    $region36: #{tpu_custom_call.1} parent=1 // pred_region
      _
    $region37: #{tpu_custom_call.1} parent=1 // pred_fallthru
      _
    // Predicated region
    $region38: #{tpu_custom_call.1} parent=1 // pred_check
      _
    $region39: #{tpu_custom_call.1} parent=1 // pred_check_branch
      %102 = sbr.rel (0) target = $region41
    $region40: #{tpu_custom_call.1} parent=1 // pred_region
      _
    $region41: #{tpu_custom_call.1} parent=1 // pred_fallthru
      _
    // Predicated region
    $region42: #{tpu_custom_call.1} parent=1 // pred_check
      _
    $region43: #{tpu_custom_call.1} parent=1 // pred_check_branch
      %104 = sbr.rel (0) target = $region45
    $region44: #{tpu_custom_call.1} parent=1 // pred_region
      _
    $region45: #{tpu_custom_call.1} parent=1 // pred_fallthru
      _
    // Predicated region
    $region46: #{tpu_custom_call.1} parent=1 // pred_check
      _
    $region47: #{tpu_custom_call.1} parent=1 // pred_check_branch
      %106 = sbr.rel (0) target = $region49
    $region48: #{tpu_custom_call.1} parent=1 // pred_region
      _
    $region49: #{tpu_custom_call.1} parent=1 // pred_fallthru
      _
    // Predicated region
    $region50: #{tpu_custom_call.1} parent=1 // pred_check
      _
    $region51: #{tpu_custom_call.1} parent=1 // pred_check_branch
      %108 = sbr.rel (0) target = $region53
    $region52: #{tpu_custom_call.1} parent=1 // pred_region
      %110 = dma.done [#allocation5], 512
    $region53: #{tpu_custom_call.1} parent=1 // pred_fallthru
      _
    // Predicated region
    $region54: #{tpu_custom_call.1} parent=1 // pred_check
      _
    $region55: #{tpu_custom_call.1} parent=1 // pred_check_branch
      %112 = sbr.rel (0) target = $region57
    $region56: #{tpu_custom_call.1} parent=1 // pred_region
      %114 = dma.done [#allocation8], 128
    $region57: #{tpu_custom_call.1} parent=1 // pred_fallthru
      _
    // Predicated region
    $region58: #{tpu_custom_call.1} parent=1 // pred_check
      _
    $region59: #{tpu_custom_call.1} parent=1 // pred_check_branch
      %116 = sbr.rel (0) target = $region61
    $region60: #{tpu_custom_call.1} parent=1 // pred_region
      %118 = dma.done [#allocation8], 128
    $region61: #{tpu_custom_call.1} parent=1 // pred_fallthru
      _
    // Predicated region
    $region62: #{tpu_custom_call.1} parent=1 // pred_check
      _
    $region63: #{tpu_custom_call.1} parent=1 // pred_check_branch
      %120 = sbr.rel (0) target = $region65
    $region64: #{tpu_custom_call.1} parent=1 // pred_region
      %122 = dma.done [#allocation11], 1024
    $region65: #{tpu_custom_call.1} parent=1 // pred_fallthru
      _
    // Predicated region
    $region66: #{tpu_custom_call.1} parent=1 // pred_check
      _
    $region67: #{tpu_custom_call.1} parent=1 // pred_check_branch
      %124 = sbr.rel (0) target = $region69
    $region68: #{tpu_custom_call.1} parent=1 // pred_region
      %126 = dma.done [#allocation11], 1024
    $region69: #{tpu_custom_call.1} parent=1 // pred_fallthru
      _
    // Predicated region
    $region70: #{tpu_custom_call.1} parent=1 // pred_check
      _
    $region71: #{tpu_custom_call.1} parent=1 // pred_check_branch
      %128 = sbr.rel (0) target = $region73
    $region72: #{tpu_custom_call.1} parent=1 // pred_region
      %130 = dma.done [#allocation14], 32
    $region73: #{tpu_custom_call.1} parent=1 // pred_fallthru
      _
    %v132 = vld [vmem:[#allocation12] sm:$0xff]
    %v133 = vld [vmem:[#allocation12 + $0x8] sm:$0xff]
    %v134 = vld [vmem:[#allocation12 + $0x10] sm:$0xff]
    %v135 = vld [vmem:[#allocation12 + $0x18] sm:$0xff]
    %v136 = vld [vmem:[#allocation12 + $0x20] sm:$0xff]
    %v137 = vld [vmem:[#allocation12 + $0x28] sm:$0xff]
    %v138 = vld [vmem:[#allocation12 + $0x30] sm:$0xff]
    %v139 = vld [vmem:[#allocation12 + $0x38] sm:$0xff]
    %v140 = vld [vmem:[#allocation13] sm:$0x3]
    %v141 = vld [vmem:[%s1] sm:$0xff]
    %v142 = vld [vmem:[#allocation4] sm:$0xf]
    %v143 = vld [vmem:[#allocation4 + $0x4] sm:$0xf]
    %v144 = vld [vmem:[#allocation4 + $0x8] sm:$0xf]
    %v145 = vld [vmem:[#allocation4 + $0xc] sm:$0xf]
    %v146 = vld [vmem:[#allocation4 + $0x10] sm:$0xf]
    %v147 = vld [vmem:[#allocation4 + $0x14] sm:$0xf]
    %v148 = vld [vmem:[#allocation4 + $0x18] sm:$0xf]
    %v149 = vld [vmem:[#allocation4 + $0x1c] sm:$0xf]
    %v150 = vld [vmem:[#allocation10] sm:$0xff]
    %v151 = vld [vmem:[#allocation10 + $0x8] sm:$0xff]
    %v152 = vld [vmem:[#allocation10 + $0x10] sm:$0xff]
    %v153 = vld [vmem:[#allocation10 + $0x18] sm:$0xff]
    %v154 = vld [vmem:[#allocation10 + $0x20] sm:$0xff]
    %v155 = vld [vmem:[#allocation10 + $0x28] sm:$0xff]
    %v156 = vld [vmem:[#allocation10 + $0x30] sm:$0xff]
    %v157 = vld [vmem:[#allocation10 + $0x38] sm:$0xff]
    %v158 = vld [vmem:[%s6] sm:$0x3]
    %v160 = vperm.slane %v158, 0
    %v161 = vperm.slane %v158, 1
    %v172 = vunpack.c.l.b16 %v142
    %v173 = vunpack.c.l.b16 %v143
    %v174 = vunpack.c.l.b16 %v144
    %v175 = vunpack.c.l.b16 %v145
    %v176 = vunpack.c.l.b16 %v146
    %v177 = vunpack.c.l.b16 %v147
    %v178 = vunpack.c.l.b16 %v148
    %v179 = vunpack.c.l.b16 %v149
    %v180 = vpack.c.b16 %v173, %v172
    %v181 = vpack.c.b16 %v175, %v174
    %v182 = vpack.c.b16 %v177, %v176
    %v183 = vpack.c.b16 %v179, %v178
    %v192 = vunpack.c.l.b16 %v150
    %v193 = vunpack.c.h.b16 %v150
    %v194 = vunpack.c.l.b16 %v151
    %v195 = vunpack.c.h.b16 %v151
    %v196 = vunpack.c.l.b16 %v152
    %v197 = vunpack.c.h.b16 %v152
    %v198 = vunpack.c.l.b16 %v153
    %v199 = vunpack.c.h.b16 %v153
    %v200 = vunpack.c.l.b16 %v154
    %v201 = vunpack.c.h.b16 %v154
    %v202 = vunpack.c.l.b16 %v155
    %v203 = vunpack.c.h.b16 %v155
    %v204 = vunpack.c.l.b16 %v156
    %v205 = vunpack.c.h.b16 %v156
    %v206 = vunpack.c.l.b16 %v157
    %v207 = vunpack.c.h.b16 %v157
    %v208 = vpack.c.b16 %v194, %v192
    %v209 = vpack.c.b16 %v195, %v193
    %v210 = vpack.c.b16 %v198, %v196
    %v211 = vpack.c.b16 %v199, %v197
    %v212 = vpack.c.b16 %v202, %v200
    %v213 = vpack.c.b16 %v203, %v201
    %v214 = vpack.c.b16 %v206, %v204
    %v215 = vpack.c.b16 %v207, %v205
    %vm224 = vcmask 523264
    %v226 = vsel %vm224, %v180, 0
    %v229 = vsel %vm224, %v181, 0
    %v232 = vsel %vm224, %v182, 0
    %v235 = vsel %vm224, %v183, 0
    %237 = vmatpush.bf16.msra.mxu0 0
    %238 = vmatpush.bf16.msra.mxu0 0
    %239 = vmatpush.bf16.msra.mxu0 0
    %240 = vmatpush.bf16.msra.mxu0 0
    %241 = vmatpush.bf16.msra.mxu0 %v214
    %242 = vmatpush.bf16.msra.mxu0 %v212
    %243 = vmatpush.bf16.msra.mxu0 %v210
    %244 = vmatpush.bf16.msra.mxu0 %v208
    %245 = vmatmul.bf16.gmra.mxu0 %v226
    %v246 = vpop.f32.mrf.mxu0
    %v247 = vadd.f32 %v160, %v246
    %v248 = vpop.f32.mrf.mxu0
    %v249 = vadd.f32 %v160, %v248
    %250 = vmatmul.bf16.gmra.mxu0 %v229
    %v251 = vpop.f32.mrf.mxu0
    %v252 = vadd.f32 %v160, %v251
    %v253 = vpop.f32.mrf.mxu0
    %v254 = vadd.f32 %v160, %v253
    %255 = vmatmul.bf16.gmra.mxu0 %v232
    %v256 = vpop.f32.mrf.mxu0
    %v257 = vadd.f32 %v160, %v256
    %v258 = vpop.f32.mrf.mxu0
    %v259 = vadd.f32 %v160, %v258
    %260 = vmatmul.bf16.gmra.mxu0 %v235
    %v261 = vpop.f32.mrf.mxu0
    %v262 = vadd.f32 %v160, %v261
    %v263 = vpop.f32.mrf.mxu0
    %v264 = vadd.f32 %v160, %v263
    %265 = vdwg.mxu0
    %266 = vmatpush.bf16.msra.mxu0 0
    %267 = vmatpush.bf16.msra.mxu0 0
    %268 = vmatpush.bf16.msra.mxu0 0
    %269 = vmatpush.bf16.msra.mxu0 0
    %270 = vmatpush.bf16.msra.mxu0 %v215
    %271 = vmatpush.bf16.msra.mxu0 %v213
    %272 = vmatpush.bf16.msra.mxu0 %v211
    %273 = vmatpush.bf16.msra.mxu0 %v209
    %274 = vmatmul.bf16.gmra.mxu0 %v226
    %v275 = vpop.f32.mrf.mxu0
    %v276 = vadd.f32 %v161, %v275
    %v277 = vpop.f32.mrf.mxu0
    %v278 = vadd.f32 %v161, %v277
    %279 = vmatmul.bf16.gmra.mxu0 %v229
    %v280 = vpop.f32.mrf.mxu0
    %v281 = vadd.f32 %v161, %v280
    %v282 = vpop.f32.mrf.mxu0
    %v283 = vadd.f32 %v161, %v282
    %284 = vmatmul.bf16.gmra.mxu0 %v232
    %v285 = vpop.f32.mrf.mxu0
    %v286 = vadd.f32 %v161, %v285
    %v287 = vpop.f32.mrf.mxu0
    %v288 = vadd.f32 %v161, %v287
    %289 = vmatmul.bf16.gmra.mxu0 %v235
    %v290 = vpop.f32.mrf.mxu0
    %v291 = vadd.f32 %v161, %v290
    %v292 = vpop.f32.mrf.mxu0
    %v293 = vadd.f32 %v161, %v292
    %294 = vdwg.mxu0
    %v295 = vld [vmem:[#allocation9] sm:$0xff]
    %v296 = vpack.c.bf16 %v295, %v295
    %v298 = vperm.slane %v140, 0
    %v299 = vperm.slane %v140, 1
    %v310 = vunpack.c.l.b16 %v132
    %v311 = vunpack.c.h.b16 %v132
    %v312 = vunpack.c.l.b16 %v133
    %v313 = vunpack.c.h.b16 %v133
    %v314 = vunpack.c.l.b16 %v134
    %v315 = vunpack.c.h.b16 %v134
    %v316 = vunpack.c.l.b16 %v135
    %v317 = vunpack.c.h.b16 %v135
    %v318 = vunpack.c.l.b16 %v136
    %v319 = vunpack.c.h.b16 %v136
    %v320 = vunpack.c.l.b16 %v137
    %v321 = vunpack.c.h.b16 %v137
    %v322 = vunpack.c.l.b16 %v138
    %v323 = vunpack.c.h.b16 %v138
    %v324 = vunpack.c.l.b16 %v139
    %v325 = vunpack.c.h.b16 %v139
    %v326 = vpack.c.b16 %v312, %v310
    %v327 = vpack.c.b16 %v313, %v311
    %v328 = vpack.c.b16 %v316, %v314
    %v329 = vpack.c.b16 %v317, %v315
    %v330 = vpack.c.b16 %v320, %v318
    %v331 = vpack.c.b16 %v321, %v319
    %v332 = vpack.c.b16 %v324, %v322
    %v333 = vpack.c.b16 %v325, %v323
    %v343 = vsel %vm224, %v296, 0
    %345 = vmatpush.bf16.msra.mxu0 0
    %346 = vmatpush.bf16.msra.mxu0 0
    %347 = vmatpush.bf16.msra.mxu0 0
    %348 = vmatpush.bf16.msra.mxu0 0
    %349 = vmatpush.bf16.msra.mxu0 %v332
    %350 = vmatpush.bf16.msra.mxu0 %v330
    %351 = vmatpush.bf16.msra.mxu0 %v328
    %352 = vmatpush.bf16.msra.mxu0 %v326
    %353 = vmatmul.bf16.gmra.mxu0 %v343
    %v354 = vpop.f32.mrf.mxu0
    %v355 = vadd.f32 %v298, %v354
    %v356 = vpop.f32.mrf.mxu0
    %357 = vdwg.mxu0
    %358 = vmatpush.bf16.msra.mxu0 0
    %359 = vmatpush.bf16.msra.mxu0 0
    %360 = vmatpush.bf16.msra.mxu0 0
    %361 = vmatpush.bf16.msra.mxu0 0
    %362 = vmatpush.bf16.msra.mxu0 %v333
    %363 = vmatpush.bf16.msra.mxu0 %v331
    %364 = vmatpush.bf16.msra.mxu0 %v329
    %365 = vmatpush.bf16.msra.mxu0 %v327
    %366 = vmatmul.bf16.gmra.mxu0 %v343
    %v367 = vpop.f32.mrf.mxu0
    %v368 = vadd.f32 %v299, %v367
    %v369 = vpop.f32.mrf.mxu0
    %370 = vdwg.mxu0
    %v371 = vadd.f32 %v247, %v355
    %v372 = vxor.u32 %v371, 2147483648
    %v373 = vmul.f32 %v372, 1.442695
    %v374 = vpow.pop %v373
    %v375 = vadd.f32 %v374, 1.0
    %v376 = vrcp.pop %v375
    %v377 = vmul.f32 %v375, %v376
    %v378 = vsub.f32 1.0, %v377
    %v379 = vmul.f32 %v376, %v378
    %v380 = vadd.f32 %v376, %v379
    %vm381 = vweird.f32 %v375
    %vm382 = vweird.f32 %v376
    %vm383 = vmor %vm381, %vm382
    %v384 = vsel %vm383, %v376, %v380
    %v385 = vand.u32 2147483647, %v375
    %vm386 = vcmp.eq.f32.partialorder %v385, 8.507059e+37
    %v387 = vand.u32 %v375, 2147483648
    %v388 = vor.u32 1.1754944e-38, %v387
    %v389 = vsel %vm386, %v388, %v384
    %v390 = vmul.f32 1.0, %v389
    %v391 = vmul.f32 %v390, %v368
    %v392 = vadd.f32 %v276, %v391
    %v393 = vtanh.pop %v392
    %v394 = vsub.f32 1.0, %v390
    %396 = vrot.lane.b32.xlu0 %v393, 64
    %v397 = vpop.permute.xlu0 %396
    %v399 = vmul.f32 %v394, %v397
    %401 = vrot.lane.b32.xlu0 %v295, 64
    %v402 = vpop.permute.xlu0 %401
    %v404 = vmul.f32 %v390, %v402
    %v405 = vadd.f32 %v399, %v404
    %vm406 = vcmp.gt.f32.partialorder %v141, 0.0
    %v407 = vsel %vm406, 1, 0
    %408 = vset.pattern.permute.xlu0 0
    %409 = vperm.xlu0 %408, %v407
    %v410 = vpop.permute.xlu0 %409
    %vm411 = vcmp.eq.s32.totalorder %v410, 1
    %v412 = vsel %vm411, %v405, %v402
    %414 = vrot.lane.b32.xlu0 %v405, 96
    %v415 = vpop.permute.xlu0 %414
    %v417 = vadd.f32 %v405, %v415
    %v418 = vmul.f32 %v417, 0.5
    %v419 = vsel %vm411, %v418, 0.0
    %421 = vrot.lane.b32.xlu0 %v419, 64
    %v422 = vpop.permute.xlu0 %421
    %vm424 = vcmask 261120
    %425 = vst.msk [vmem:[#allocation2] sm:$0xff] %vm424, %v422
    %v426 = vpack.c.bf16 %v412, %v412
    %428 = vrot.lane.b32.xlu0 %v426, 64
    %v429 = vpop.permute.xlu0 %428
    %v431 = vsel %vm224, %v429, 0
    %433 = vmatpush.bf16.msra.mxu0 0
    %434 = vmatpush.bf16.msra.mxu0 0
    %435 = vmatpush.bf16.msra.mxu0 0
    %436 = vmatpush.bf16.msra.mxu0 0
    %437 = vmatpush.bf16.msra.mxu0 %v332
    %438 = vmatpush.bf16.msra.mxu0 %v330
    %439 = vmatpush.bf16.msra.mxu0 %v328
    %440 = vmatpush.bf16.msra.mxu0 %v326
    %441 = vmatmul.bf16.gmra.mxu0 %v431
    %v442 = vpop.f32.mrf.mxu0
    %v443 = vadd.f32 %v298, %v442
    %v444 = vpop.f32.mrf.mxu0
    %445 = vdwg.mxu0
    %446 = vmatpush.bf16.msra.mxu0 0
    %447 = vmatpush.bf16.msra.mxu0 0
    %448 = vmatpush.bf16.msra.mxu0 0
    %449 = vmatpush.bf16.msra.mxu0 0
    %450 = vmatpush.bf16.msra.mxu0 %v333
    %451 = vmatpush.bf16.msra.mxu0 %v331
    %452 = vmatpush.bf16.msra.mxu0 %v329
    %453 = vmatpush.bf16.msra.mxu0 %v327
    %454 = vmatmul.bf16.gmra.mxu0 %v431
    %v455 = vpop.f32.mrf.mxu0
    %v456 = vadd.f32 %v299, %v455
    %v457 = vpop.f32.mrf.mxu0
    %458 = vdwg.mxu0
    %v459 = vadd.f32 %v249, %v443
    %v460 = vxor.u32 %v459, 2147483648
    %v461 = vmul.f32 %v460, 1.442695
    %v462 = vpow.pop %v461
    %v463 = vadd.f32 %v462, 1.0
    %v464 = vrcp.pop %v463
    %v465 = vmul.f32 %v463, %v464
    %v466 = vsub.f32 1.0, %v465
    %v467 = vmul.f32 %v464, %v466
    %v468 = vadd.f32 %v464, %v467
    %vm469 = vweird.f32 %v463
    %vm470 = vweird.f32 %v464
    %vm471 = vmor %vm469, %vm470
    %v472 = vsel %vm471, %v464, %v468
    %v473 = vand.u32 2147483647, %v463
    %vm474 = vcmp.eq.f32.partialorder %v473, 8.507059e+37
    %v475 = vand.u32 %v463, 2147483648
    %v476 = vor.u32 1.1754944e-38, %v475
    %v477 = vsel %vm474, %v476, %v472
    %v478 = vmul.f32 1.0, %v477
    %v479 = vmul.f32 %v478, %v456
    %v480 = vadd.f32 %v278, %v479
    %v481 = vtanh.pop %v480
    %v482 = vsub.f32 1.0, %v478
    %484 = vrot.lane.b32.xlu0 %v481, 64
    %v485 = vpop.permute.xlu0 %484
    %v487 = vmul.f32 %v482, %v485
    %v488 = vmul.f32 %v478, %v412
    %v489 = vadd.f32 %v487, %v488
    %vm490 = vcmp.gt.f32.partialorder %v141, 1.0
    %v491 = vsel %vm490, 1, 0
    %492 = vset.pattern.permute.xlu0 0
    %493 = vperm.xlu0 %492, %v491
    %v494 = vpop.permute.xlu0 %493
    %vm495 = vcmp.eq.s32.totalorder %v494, 1
    %v496 = vsel %vm495, %v489, %v412
    %498 = vrot.lane.b32.xlu0 %v489, 96
    %v499 = vpop.permute.xlu0 %498
    %v501 = vadd.f32 %v489, %v499
    %v502 = vmul.f32 %v501, 0.5
    %v503 = vsel %vm495, %v502, 0.0
    %505 = vrot.lane.b32.xlu0 %v503, 64
    %v506 = vpop.permute.xlu0 %505
    %s508 = scalar_lea.vmem [#allocation2], 8
    %509 = vst.msk [vmem:[%s508] sm:$0xff] %vm424, %v506
    %v510 = vpack.c.bf16 %v496, %v496
    %512 = vrot.lane.b32.xlu0 %v510, 64
    %v513 = vpop.permute.xlu0 %512
    %v515 = vsel %vm224, %v513, 0
    %517 = vmatpush.bf16.msra.mxu0 0
    %518 = vmatpush.bf16.msra.mxu0 0
    %519 = vmatpush.bf16.msra.mxu0 0
    %520 = vmatpush.bf16.msra.mxu0 0
    %521 = vmatpush.bf16.msra.mxu0 %v332
    %522 = vmatpush.bf16.msra.mxu0 %v330
    %523 = vmatpush.bf16.msra.mxu0 %v328
    %524 = vmatpush.bf16.msra.mxu0 %v326
    %525 = vmatmul.bf16.gmra.mxu0 %v515
    %v526 = vpop.f32.mrf.mxu0
    %v527 = vadd.f32 %v298, %v526
    %v528 = vpop.f32.mrf.mxu0
    %529 = vdwg.mxu0
    %530 = vmatpush.bf16.msra.mxu0 0
    %531 = vmatpush.bf16.msra.mxu0 0
    %532 = vmatpush.bf16.msra.mxu0 0
    %533 = vmatpush.bf16.msra.mxu0 0
    %534 = vmatpush.bf16.msra.mxu0 %v333
    %535 = vmatpush.bf16.msra.mxu0 %v331
    %536 = vmatpush.bf16.msra.mxu0 %v329
    %537 = vmatpush.bf16.msra.mxu0 %v327
    %538 = vmatmul.bf16.gmra.mxu0 %v515
    %v539 = vpop.f32.mrf.mxu0
    %v540 = vadd.f32 %v299, %v539
    %v541 = vpop.f32.mrf.mxu0
    %542 = vdwg.mxu0
    %v543 = vadd.f32 %v252, %v527
    %v544 = vxor.u32 %v543, 2147483648
    %v545 = vmul.f32 %v544, 1.442695
    %v546 = vpow.pop %v545
    %v547 = vadd.f32 %v546, 1.0
    %v548 = vrcp.pop %v547
    %v549 = vmul.f32 %v547, %v548
    %v550 = vsub.f32 1.0, %v549
    %v551 = vmul.f32 %v548, %v550
    %v552 = vadd.f32 %v548, %v551
    %vm553 = vweird.f32 %v547
    %vm554 = vweird.f32 %v548
    %vm555 = vmor %vm553, %vm554
    %v556 = vsel %vm555, %v548, %v552
    %v557 = vand.u32 2147483647, %v547
    %vm558 = vcmp.eq.f32.partialorder %v557, 8.507059e+37
    %v559 = vand.u32 %v547, 2147483648
    %v560 = vor.u32 1.1754944e-38, %v559
    %v561 = vsel %vm558, %v560, %v556
    %v562 = vmul.f32 1.0, %v561
    %v563 = vmul.f32 %v562, %v540
    %v564 = vadd.f32 %v281, %v563
    %v565 = vtanh.pop %v564
    %v566 = vsub.f32 1.0, %v562
    %568 = vrot.lane.b32.xlu0 %v565, 64
    %v569 = vpop.permute.xlu0 %568
    %v571 = vmul.f32 %v566, %v569
    %v572 = vmul.f32 %v562, %v496
    %v573 = vadd.f32 %v571, %v572
    %vm574 = vcmp.gt.f32.partialorder %v141, 2.0
    %v575 = vsel %vm574, 1, 0
    %576 = vset.pattern.permute.xlu0 0
    %577 = vperm.xlu0 %576, %v575
    %v578 = vpop.permute.xlu0 %577
    %vm579 = vcmp.eq.s32.totalorder %v578, 1
    %v580 = vsel %vm579, %v573, %v496
    %582 = vrot.lane.b32.xlu0 %v573, 96
    %v583 = vpop.permute.xlu0 %582
    %v585 = vadd.f32 %v573, %v583
    %v586 = vmul.f32 %v585, 0.5
    %v587 = vsel %vm579, %v586, 0.0
    %589 = vrot.lane.b32.xlu0 %v587, 64
    %v590 = vpop.permute.xlu0 %589
    %s592 = scalar_lea.vmem [#allocation2], 16
    %593 = vst.msk [vmem:[%s592] sm:$0xff] %vm424, %v590
    %v594 = vpack.c.bf16 %v580, %v580
    %596 = vrot.lane.b32.xlu0 %v594, 64
    %v597 = vpop.permute.xlu0 %596
    %v599 = vsel %vm224, %v597, 0
    %601 = vmatpush.bf16.msra.mxu0 0
    %602 = vmatpush.bf16.msra.mxu0 0
    %603 = vmatpush.bf16.msra.mxu0 0
    %604 = vmatpush.bf16.msra.mxu0 0
    %605 = vmatpush.bf16.msra.mxu0 %v332
    %606 = vmatpush.bf16.msra.mxu0 %v330
    %607 = vmatpush.bf16.msra.mxu0 %v328
    %608 = vmatpush.bf16.msra.mxu0 %v326
    %609 = vmatmul.bf16.gmra.mxu0 %v599
    %v610 = vpop.f32.mrf.mxu0
    %v611 = vadd.f32 %v298, %v610
    %v612 = vpop.f32.mrf.mxu0
    %613 = vdwg.mxu0
    %614 = vmatpush.bf16.msra.mxu0 0
    %615 = vmatpush.bf16.msra.mxu0 0
    %616 = vmatpush.bf16.msra.mxu0 0
    %617 = vmatpush.bf16.msra.mxu0 0
    %618 = vmatpush.bf16.msra.mxu0 %v333
    %619 = vmatpush.bf16.msra.mxu0 %v331
    %620 = vmatpush.bf16.msra.mxu0 %v329
    %621 = vmatpush.bf16.msra.mxu0 %v327
    %622 = vmatmul.bf16.gmra.mxu0 %v599
    %v623 = vpop.f32.mrf.mxu0
    %v624 = vadd.f32 %v299, %v623
    %v625 = vpop.f32.mrf.mxu0
    %626 = vdwg.mxu0
    %v627 = vadd.f32 %v254, %v611
    %v628 = vxor.u32 %v627, 2147483648
    %v629 = vmul.f32 %v628, 1.442695
    %v630 = vpow.pop %v629
    %v631 = vadd.f32 %v630, 1.0
    %v632 = vrcp.pop %v631
    %v633 = vmul.f32 %v631, %v632
    %v634 = vsub.f32 1.0, %v633
    %v635 = vmul.f32 %v632, %v634
    %v636 = vadd.f32 %v632, %v635
    %vm637 = vweird.f32 %v631
    %vm638 = vweird.f32 %v632
    %vm639 = vmor %vm637, %vm638
    %v640 = vsel %vm639, %v632, %v636
    %v641 = vand.u32 2147483647, %v631
    %vm642 = vcmp.eq.f32.partialorder %v641, 8.507059e+37
    %v643 = vand.u32 %v631, 2147483648
    %v644 = vor.u32 1.1754944e-38, %v643
    %v645 = vsel %vm642, %v644, %v640
    %v646 = vmul.f32 1.0, %v645
    %v647 = vmul.f32 %v646, %v624
    %v648 = vadd.f32 %v283, %v647
    %v649 = vtanh.pop %v648
    %v650 = vsub.f32 1.0, %v646
    %652 = vrot.lane.b32.xlu0 %v649, 64
    %v653 = vpop.permute.xlu0 %652
    %v655 = vmul.f32 %v650, %v653
    %v656 = vmul.f32 %v646, %v580
    %v657 = vadd.f32 %v655, %v656
    %vm658 = vcmp.gt.f32.partialorder %v141, 3.0
    %v659 = vsel %vm658, 1, 0
    %660 = vset.pattern.permute.xlu0 0
    %661 = vperm.xlu0 %660, %v659
    %v662 = vpop.permute.xlu0 %661
    %vm663 = vcmp.eq.s32.totalorder %v662, 1
    %v664 = vsel %vm663, %v657, %v580
    %666 = vrot.lane.b32.xlu0 %v657, 96
    %v667 = vpop.permute.xlu0 %666
    %v669 = vadd.f32 %v657, %v667
    %v670 = vmul.f32 %v669, 0.5
    %v671 = vsel %vm663, %v670, 0.0
    %673 = vrot.lane.b32.xlu0 %v671, 64
    %v674 = vpop.permute.xlu0 %673
    %s676 = scalar_lea.vmem [#allocation2], 24
    %677 = vst.msk [vmem:[%s676] sm:$0xff] %vm424, %v674
    %v678 = vpack.c.bf16 %v664, %v664
    %680 = vrot.lane.b32.xlu0 %v678, 64
    %v681 = vpop.permute.xlu0 %680
    %v683 = vsel %vm224, %v681, 0
    %685 = vmatpush.bf16.msra.mxu0 0
    %686 = vmatpush.bf16.msra.mxu0 0
    %687 = vmatpush.bf16.msra.mxu0 0
    %688 = vmatpush.bf16.msra.mxu0 0
    %689 = vmatpush.bf16.msra.mxu0 %v332
    %690 = vmatpush.bf16.msra.mxu0 %v330
    %691 = vmatpush.bf16.msra.mxu0 %v328
    %692 = vmatpush.bf16.msra.mxu0 %v326
    %693 = vmatmul.bf16.gmra.mxu0 %v683
    %v694 = vpop.f32.mrf.mxu0
    %v695 = vadd.f32 %v298, %v694
    %v696 = vpop.f32.mrf.mxu0
    %697 = vdwg.mxu0
    %698 = vmatpush.bf16.msra.mxu0 0
    %699 = vmatpush.bf16.msra.mxu0 0
    %700 = vmatpush.bf16.msra.mxu0 0
    %701 = vmatpush.bf16.msra.mxu0 0
    %702 = vmatpush.bf16.msra.mxu0 %v333
    %703 = vmatpush.bf16.msra.mxu0 %v331
    %704 = vmatpush.bf16.msra.mxu0 %v329
    %705 = vmatpush.bf16.msra.mxu0 %v327
    %706 = vmatmul.bf16.gmra.mxu0 %v683
    %v707 = vpop.f32.mrf.mxu0
    %v708 = vadd.f32 %v299, %v707
    %v709 = vpop.f32.mrf.mxu0
    %710 = vdwg.mxu0
    %v711 = vadd.f32 %v257, %v695
    %v712 = vxor.u32 %v711, 2147483648
    %v713 = vmul.f32 %v712, 1.442695
    %v714 = vpow.pop %v713
    %v715 = vadd.f32 %v714, 1.0
    %v716 = vrcp.pop %v715
    %v717 = vmul.f32 %v715, %v716
    %v718 = vsub.f32 1.0, %v717
    %v719 = vmul.f32 %v716, %v718
    %v720 = vadd.f32 %v716, %v719
    %vm721 = vweird.f32 %v715
    %vm722 = vweird.f32 %v716
    %vm723 = vmor %vm721, %vm722
    %v724 = vsel %vm723, %v716, %v720
    %v725 = vand.u32 2147483647, %v715
    %vm726 = vcmp.eq.f32.partialorder %v725, 8.507059e+37
    %v727 = vand.u32 %v715, 2147483648
    %v728 = vor.u32 1.1754944e-38, %v727
    %v729 = vsel %vm726, %v728, %v724
    %v730 = vmul.f32 1.0, %v729
    %v731 = vmul.f32 %v730, %v708
    %v732 = vadd.f32 %v286, %v731
    %v733 = vtanh.pop %v732
    %v734 = vsub.f32 1.0, %v730
    %736 = vrot.lane.b32.xlu0 %v733, 64
    %v737 = vpop.permute.xlu0 %736
    %v739 = vmul.f32 %v734, %v737
    %v740 = vmul.f32 %v730, %v664
    %v741 = vadd.f32 %v739, %v740
    %vm742 = vcmp.gt.f32.partialorder %v141, 4.0
    %v743 = vsel %vm742, 1, 0
    %744 = vset.pattern.permute.xlu0 0
    %745 = vperm.xlu0 %744, %v743
    %v746 = vpop.permute.xlu0 %745
    %vm747 = vcmp.eq.s32.totalorder %v746, 1
    %v748 = vsel %vm747, %v741, %v664
    %750 = vrot.lane.b32.xlu0 %v741, 96
    %v751 = vpop.permute.xlu0 %750
    %v753 = vadd.f32 %v741, %v751
    %v754 = vmul.f32 %v753, 0.5
    %v755 = vsel %vm747, %v754, 0.0
    %757 = vrot.lane.b32.xlu0 %v755, 64
    %v758 = vpop.permute.xlu0 %757
    %s760 = scalar_lea.vmem [#allocation2], 32
    %761 = vst.msk [vmem:[%s760] sm:$0xff] %vm424, %v758
    %v762 = vpack.c.bf16 %v748, %v748
    %764 = vrot.lane.b32.xlu0 %v762, 64
    %v765 = vpop.permute.xlu0 %764
    %v767 = vsel %vm224, %v765, 0
    %769 = vmatpush.bf16.msra.mxu0 0
    %770 = vmatpush.bf16.msra.mxu0 0
    %771 = vmatpush.bf16.msra.mxu0 0
    %772 = vmatpush.bf16.msra.mxu0 0
    %773 = vmatpush.bf16.msra.mxu0 %v332
    %774 = vmatpush.bf16.msra.mxu0 %v330
    %775 = vmatpush.bf16.msra.mxu0 %v328
    %776 = vmatpush.bf16.msra.mxu0 %v326
    %777 = vmatmul.bf16.gmra.mxu0 %v767
    %v778 = vpop.f32.mrf.mxu0
    %v779 = vadd.f32 %v298, %v778
    %v780 = vpop.f32.mrf.mxu0
    %781 = vdwg.mxu0
    %782 = vmatpush.bf16.msra.mxu0 0
    %783 = vmatpush.bf16.msra.mxu0 0
    %784 = vmatpush.bf16.msra.mxu0 0
    %785 = vmatpush.bf16.msra.mxu0 0
    %786 = vmatpush.bf16.msra.mxu0 %v333
    %787 = vmatpush.bf16.msra.mxu0 %v331
    %788 = vmatpush.bf16.msra.mxu0 %v329
    %789 = vmatpush.bf16.msra.mxu0 %v327
    %790 = vmatmul.bf16.gmra.mxu0 %v767
    %v791 = vpop.f32.mrf.mxu0
    %v792 = vadd.f32 %v299, %v791
    %v793 = vpop.f32.mrf.mxu0
    %794 = vdwg.mxu0
    %v795 = vadd.f32 %v259, %v779
    %v796 = vxor.u32 %v795, 2147483648
    %v797 = vmul.f32 %v796, 1.442695
    %v798 = vpow.pop %v797
    %v799 = vadd.f32 %v798, 1.0
    %v800 = vrcp.pop %v799
    %v801 = vmul.f32 %v799, %v800
    %v802 = vsub.f32 1.0, %v801
    %v803 = vmul.f32 %v800, %v802
    %v804 = vadd.f32 %v800, %v803
    %vm805 = vweird.f32 %v799
    %vm806 = vweird.f32 %v800
    %vm807 = vmor %vm805, %vm806
    %v808 = vsel %vm807, %v800, %v804
    %v809 = vand.u32 2147483647, %v799
    %vm810 = vcmp.eq.f32.partialorder %v809, 8.507059e+37
    %v811 = vand.u32 %v799, 2147483648
    %v812 = vor.u32 1.1754944e-38, %v811
    %v813 = vsel %vm810, %v812, %v808
    %v814 = vmul.f32 1.0, %v813
    %v815 = vmul.f32 %v814, %v792
    %v816 = vadd.f32 %v288, %v815
    %v817 = vtanh.pop %v816
    %v818 = vsub.f32 1.0, %v814
    %820 = vrot.lane.b32.xlu0 %v817, 64
    %v821 = vpop.permute.xlu0 %820
    %v823 = vmul.f32 %v818, %v821
    %v824 = vmul.f32 %v814, %v748
    %v825 = vadd.f32 %v823, %v824
    %vm826 = vcmp.gt.f32.partialorder %v141, 5.0
    %v827 = vsel %vm826, 1, 0
    %828 = vset.pattern.permute.xlu0 0
    %829 = vperm.xlu0 %828, %v827
    %v830 = vpop.permute.xlu0 %829
    %vm831 = vcmp.eq.s32.totalorder %v830, 1
    %v832 = vsel %vm831, %v825, %v748
    %834 = vrot.lane.b32.xlu0 %v825, 96
    %v835 = vpop.permute.xlu0 %834
    %v837 = vadd.f32 %v825, %v835
    %v838 = vmul.f32 %v837, 0.5
    %v839 = vsel %vm831, %v838, 0.0
    %841 = vrot.lane.b32.xlu0 %v839, 64
    %v842 = vpop.permute.xlu0 %841
    %s844 = scalar_lea.vmem [#allocation2], 40
    %845 = vst.msk [vmem:[%s844] sm:$0xff] %vm424, %v842
    %v846 = vpack.c.bf16 %v832, %v832
    %848 = vrot.lane.b32.xlu0 %v846, 64
    %v849 = vpop.permute.xlu0 %848
    %v851 = vsel %vm224, %v849, 0
    %853 = vmatpush.bf16.msra.mxu0 0
    %854 = vmatpush.bf16.msra.mxu0 0
    %855 = vmatpush.bf16.msra.mxu0 0
    %856 = vmatpush.bf16.msra.mxu0 0
    %857 = vmatpush.bf16.msra.mxu0 %v332
    %858 = vmatpush.bf16.msra.mxu0 %v330
    %859 = vmatpush.bf16.msra.mxu0 %v328
    %860 = vmatpush.bf16.msra.mxu0 %v326
    %861 = vmatmul.bf16.gmra.mxu0 %v851
    %v862 = vpop.f32.mrf.mxu0
    %v863 = vadd.f32 %v298, %v862
    %v864 = vpop.f32.mrf.mxu0
    %865 = vdwg.mxu0
    %866 = vmatpush.bf16.msra.mxu0 0
    %867 = vmatpush.bf16.msra.mxu0 0
    %868 = vmatpush.bf16.msra.mxu0 0
    %869 = vmatpush.bf16.msra.mxu0 0
    %870 = vmatpush.bf16.msra.mxu0 %v333
    %871 = vmatpush.bf16.msra.mxu0 %v331
    %872 = vmatpush.bf16.msra.mxu0 %v329
    %873 = vmatpush.bf16.msra.mxu0 %v327
    %874 = vmatmul.bf16.gmra.mxu0 %v851
    %v875 = vpop.f32.mrf.mxu0
    %v876 = vadd.f32 %v299, %v875
    %v877 = vpop.f32.mrf.mxu0
    %878 = vdwg.mxu0
    %v879 = vadd.f32 %v262, %v863
    %v880 = vxor.u32 %v879, 2147483648
    %v881 = vmul.f32 %v880, 1.442695
    %v882 = vpow.pop %v881
    %v883 = vadd.f32 %v882, 1.0
    %v884 = vrcp.pop %v883
    %v885 = vmul.f32 %v883, %v884
    %v886 = vsub.f32 1.0, %v885
    %v887 = vmul.f32 %v884, %v886
    %v888 = vadd.f32 %v884, %v887
    %vm889 = vweird.f32 %v883
    %vm890 = vweird.f32 %v884
    %vm891 = vmor %vm889, %vm890
    %v892 = vsel %vm891, %v884, %v888
    %v893 = vand.u32 2147483647, %v883
    %vm894 = vcmp.eq.f32.partialorder %v893, 8.507059e+37
    %v895 = vand.u32 %v883, 2147483648
    %v896 = vor.u32 1.1754944e-38, %v895
    %v897 = vsel %vm894, %v896, %v892
    %v898 = vmul.f32 1.0, %v897
    %v899 = vmul.f32 %v898, %v876
    %v900 = vadd.f32 %v291, %v899
    %v901 = vtanh.pop %v900
    %v902 = vsub.f32 1.0, %v898
    %904 = vrot.lane.b32.xlu0 %v901, 64
    %v905 = vpop.permute.xlu0 %904
    %v907 = vmul.f32 %v902, %v905
    %v908 = vmul.f32 %v898, %v832
    %v909 = vadd.f32 %v907, %v908
    %vm910 = vcmp.gt.f32.partialorder %v141, 6.0
    %v911 = vsel %vm910, 1, 0
    %912 = vset.pattern.permute.xlu0 0
    %913 = vperm.xlu0 %912, %v911
    %v914 = vpop.permute.xlu0 %913
    %vm915 = vcmp.eq.s32.totalorder %v914, 1
    %v916 = vsel %vm915, %v909, %v832
    %918 = vrot.lane.b32.xlu0 %v909, 96
    %v919 = vpop.permute.xlu0 %918
    %v921 = vadd.f32 %v909, %v919
    %v922 = vmul.f32 %v921, 0.5
    %v923 = vsel %vm915, %v922, 0.0
    %925 = vrot.lane.b32.xlu0 %v923, 64
    %v926 = vpop.permute.xlu0 %925
    %s928 = scalar_lea.vmem [#allocation2], 48
    %929 = vst.msk [vmem:[%s928] sm:$0xff] %vm424, %v926
    %v930 = vpack.c.bf16 %v916, %v916
    %932 = vrot.lane.b32.xlu0 %v930, 64
    %v933 = vpop.permute.xlu0 %932
    %v935 = vsel %vm224, %v933, 0
    %937 = vmatpush.bf16.msra.mxu0 0
    %938 = vmatpush.bf16.msra.mxu0 0
    %939 = vmatpush.bf16.msra.mxu0 0
    %940 = vmatpush.bf16.msra.mxu0 0
    %941 = vmatpush.bf16.msra.mxu0 %v332
    %942 = vmatpush.bf16.msra.mxu0 %v330
    %943 = vmatpush.bf16.msra.mxu0 %v328
    %944 = vmatpush.bf16.msra.mxu0 %v326
    %945 = vmatmul.bf16.gmra.mxu0 %v935
    %v946 = vpop.f32.mrf.mxu0
    %v947 = vadd.f32 %v298, %v946
    %v948 = vpop.f32.mrf.mxu0
    %949 = vdwg.mxu0
    %950 = vmatpush.bf16.msra.mxu0 0
    %951 = vmatpush.bf16.msra.mxu0 0
    %952 = vmatpush.bf16.msra.mxu0 0
    %953 = vmatpush.bf16.msra.mxu0 0
    %954 = vmatpush.bf16.msra.mxu0 %v333
    %955 = vmatpush.bf16.msra.mxu0 %v331
    %956 = vmatpush.bf16.msra.mxu0 %v329
    %957 = vmatpush.bf16.msra.mxu0 %v327
    %958 = vmatmul.bf16.gmra.mxu0 %v935
    %v959 = vpop.f32.mrf.mxu0
    %v960 = vadd.f32 %v299, %v959
    %v961 = vpop.f32.mrf.mxu0
    %962 = vdwg.mxu0
    %v963 = vadd.f32 %v264, %v947
    %v964 = vxor.u32 %v963, 2147483648
    %v965 = vmul.f32 %v964, 1.442695
    %v966 = vpow.pop %v965
    %v967 = vadd.f32 %v966, 1.0
    %v968 = vrcp.pop %v967
    %v969 = vmul.f32 %v967, %v968
    %v970 = vsub.f32 1.0, %v969
    %v971 = vmul.f32 %v968, %v970
    %v972 = vadd.f32 %v968, %v971
    %vm973 = vweird.f32 %v967
    %vm974 = vweird.f32 %v968
    %vm975 = vmor %vm973, %vm974
    %v976 = vsel %vm975, %v968, %v972
    %v977 = vand.u32 2147483647, %v967
    %vm978 = vcmp.eq.f32.partialorder %v977, 8.507059e+37
    %v979 = vand.u32 %v967, 2147483648
    %v980 = vor.u32 1.1754944e-38, %v979
    %v981 = vsel %vm978, %v980, %v976
    %v982 = vmul.f32 1.0, %v981
    %v983 = vmul.f32 %v982, %v960
    %v984 = vadd.f32 %v293, %v983
    %v985 = vtanh.pop %v984
    %v986 = vsub.f32 1.0, %v982
    %988 = vrot.lane.b32.xlu0 %v985, 64
    %v989 = vpop.permute.xlu0 %988
    %v991 = vmul.f32 %v986, %v989
    %v992 = vmul.f32 %v982, %v916
    %v993 = vadd.f32 %v991, %v992
    %vm994 = vcmp.gt.f32.partialorder %v141, 7.0
    %996 = vrot.lane.b32.xlu0 %v993, 96
    %v997 = vpop.permute.xlu0 %996
    %v999 = vadd.f32 %v993, %v997
    %v1000 = vmul.f32 %v999, 0.5
    %v1001 = vsel %vm994, 1, 0
    %1002 = vset.pattern.permute.xlu0 0
    %1003 = vperm.xlu0 %1002, %v1001
    %v1004 = vpop.permute.xlu0 %1003
    %vm1005 = vcmp.eq.s32.totalorder %v1004, 1
    %v1006 = vsel %vm1005, %v1000, 0.0
    %1008 = vrot.lane.b32.xlu0 %v1006, 64
    %v1009 = vpop.permute.xlu0 %1008
    %s1011 = scalar_lea.vmem [#allocation2], 56
    %1012 = vst.msk [vmem:[%s1011] sm:$0xff] %vm424, %v1009
    %v1013 = vld [vmem:[#allocation2] sm:$0xff]
    %v1014 = vld [vmem:[#allocation2 + $0x8] sm:$0xff]
    %v1015 = vld [vmem:[#allocation2 + $0x10] sm:$0xff]
    %v1016 = vld [vmem:[#allocation2 + $0x18] sm:$0xff]
    %v1017 = vld [vmem:[#allocation2 + $0x20] sm:$0xff]
    %v1018 = vld [vmem:[#allocation2 + $0x28] sm:$0xff]
    %v1019 = vld [vmem:[#allocation2 + $0x30] sm:$0xff]
    %v1020 = vld [vmem:[#allocation2 + $0x38] sm:$0xff]
    %v1021 = vld [vmem:[%s8] sm:$0x1]
    %v1022 = vtanh.pop %v1013
    %v1023 = vtanh.pop %v1014
    %v1024 = vtanh.pop %v1015
    %v1025 = vtanh.pop %v1016
    %v1026 = vtanh.pop %v1017
    %v1027 = vtanh.pop %v1018
    %v1028 = vtanh.pop %v1019
    %v1029 = vtanh.pop %v1020
    %v1031 = vperm.slane %v1021, 0
    %v1033 = vmul.f32 %v1022, %v1031
    %v1034 = vmul.f32 %v1023, %v1031
    %v1035 = vmul.f32 %v1024, %v1031
    %v1036 = vmul.f32 %v1025, %v1031
    %v1037 = vmul.f32 %v1026, %v1031
    %v1038 = vmul.f32 %v1027, %v1031
    %v1039 = vmul.f32 %v1028, %v1031
    %v1040 = vmul.f32 %v1029, %v1031
    %v1041 = vsel %vm424, %v1033, 0.0
    %1042 = vadd.xlane.f32.xlu0 %v1041
    %v1043 = vpop.xlane.xlu0 %1042
    %v1044 = vsel %vm424, %v1034, 0.0
    %1045 = vadd.xlane.f32.xlu0 %v1044
    %v1046 = vpop.xlane.xlu0 %1045
    %v1047 = vsel %vm424, %v1035, 0.0
    %1048 = vadd.xlane.f32.xlu0 %v1047
    %v1049 = vpop.xlane.xlu0 %1048
    %v1050 = vsel %vm424, %v1036, 0.0
    %1051 = vadd.xlane.f32.xlu0 %v1050
    %v1052 = vpop.xlane.xlu0 %1051
    %v1053 = vsel %vm424, %v1037, 0.0
    %1054 = vadd.xlane.f32.xlu0 %v1053
    %v1055 = vpop.xlane.xlu0 %1054
    %v1056 = vsel %vm424, %v1038, 0.0
    %1057 = vadd.xlane.f32.xlu0 %v1056
    %v1058 = vpop.xlane.xlu0 %1057
    %v1059 = vsel %vm424, %v1039, 0.0
    %1060 = vadd.xlane.f32.xlu0 %v1059
    %v1061 = vpop.xlane.xlu0 %1060
    %v1062 = vsel %vm424, %v1040, 0.0
    %1063 = vadd.xlane.f32.xlu0 %v1062
    %v1064 = vpop.xlane.xlu0 %1063
    %s1065 = sld [smem:[#allocation3]]
    %v1066 = vstv %s1065
    %v1067 = vadd.f32 %v1043, %v1066
    %v1068 = vadd.f32 %v1046, %v1066
    %v1069 = vadd.f32 %v1049, %v1066
    %v1070 = vadd.f32 %v1052, %v1066
    %v1071 = vadd.f32 %v1055, %v1066
    %v1072 = vadd.f32 %v1058, %v1066
    %v1073 = vadd.f32 %v1061, %v1066
    %v1074 = vadd.f32 %v1064, %v1066
    %v1075 = vld [vmem:[#allocation7] sm:$0xff]
    %vm1076 = vcmp.gt.f32.partialorder %v1075, 0.0
    %v1085 = vlaneseq
    %v1086 = vand.u32 %v1085, 127
    %v1087 = vperm.slane %v1067, %v1086
    %v1088 = vperm.slane %v1068, %v1086
    %v1089 = vperm.slane %v1069, %v1086
    %v1090 = vperm.slane %v1070, %v1086
    %v1091 = vperm.slane %v1071, %v1086
    %v1092 = vperm.slane %v1072, %v1086
    %v1093 = vperm.slane %v1073, %v1086
    %v1094 = vperm.slane %v1074, %v1086
    %vm1095 = vcmask 1041409
    %v1096 = vsel %vm1095, %v1088, %v1087
    %vm1097 = vcmask 1042434
    %v1098 = vsel %vm1097, %v1089, %v1096
    %vm1099 = vcmask 1043459
    %v1100 = vsel %vm1099, %v1090, %v1098
    %vm1101 = vcmask 1044484
    %v1102 = vsel %vm1101, %v1091, %v1100
    %vm1103 = vcmask 1045509
    %v1104 = vsel %vm1103, %v1092, %v1102
    %vm1105 = vcmask 1046534
    %v1106 = vsel %vm1105, %v1093, %v1104
    %vm1107 = vcmask 1047559
    %v1108 = vsel %vm1107, %v1094, %v1106
    %v1110 = vsel %vm1076, %v1108, -4.2949673e+09
    %vm1111 = vcmask 64512
    %v1112 = vsel %vm1111, %v1110, -inf
    %v1113 = vrot.slane %v1112, 4
    %v1114 = vmax.f32 %v1112, %v1113
    %v1115 = vrot.slane %v1114, 2
    %v1116 = vmax.f32 %v1114, %v1115
    %v1117 = vrot.slane %v1116, 1
    %v1118 = vmax.f32 %v1116, %v1117
    %v1119 = vsub.f32 %v1110, %v1118
    %v1120 = vmul.f32 %v1119, 1.442695
    %v1121 = vpow.pop %v1120
    %v1122 = vsel %vm1111, %v1121, 0.0
    %v1123 = vrot.slane %v1122, 4
    %v1124 = vadd.f32 %v1122, %v1123
    %v1125 = vrot.slane %v1124, 2
    %v1126 = vadd.f32 %v1124, %v1125
    %v1127 = vrot.slane %v1126, 1
    %v1128 = vadd.f32 %v1126, %v1127
    %v1129 = vrcp.pop %v1128
    %v1130 = vmul.f32 %v1121, %v1129
    %v1131 = vperm.slane %v1130, 0
    %v1132 = vlaneseq
    %v1133 = vshrl.u32 %v1132, 7
    %1135 = vset.pattern.permute.xlu0 %v1133
    %1136 = vperm.xlu0 %1135, %v1131
    %v1137 = vpop.permute.xlu0 %1136
    %v1138 = vperm.slane %v1130, 1
    %v1139 = vlaneseq
    %v1140 = vshrl.u32 %v1139, 7
    %1142 = vset.pattern.permute.xlu0 %v1140
    %1143 = vperm.xlu0 %1142, %v1138
    %v1144 = vpop.permute.xlu0 %1143
    %v1145 = vperm.slane %v1130, 2
    %v1146 = vlaneseq
    %v1147 = vshrl.u32 %v1146, 7
    %1149 = vset.pattern.permute.xlu0 %v1147
    %1150 = vperm.xlu0 %1149, %v1145
    %v1151 = vpop.permute.xlu0 %1150
    %v1152 = vperm.slane %v1130, 3
    %v1153 = vlaneseq
    %v1154 = vshrl.u32 %v1153, 7
    %1156 = vset.pattern.permute.xlu0 %v1154
    %1157 = vperm.xlu0 %1156, %v1152
    %v1158 = vpop.permute.xlu0 %1157
    %v1159 = vperm.slane %v1130, 4
    %v1160 = vlaneseq
    %v1161 = vshrl.u32 %v1160, 7
    %1163 = vset.pattern.permute.xlu0 %v1161
    %1164 = vperm.xlu0 %1163, %v1159
    %v1165 = vpop.permute.xlu0 %1164
    %v1166 = vperm.slane %v1130, 5
    %v1167 = vlaneseq
    %v1168 = vshrl.u32 %v1167, 7
    %1170 = vset.pattern.permute.xlu0 %v1168
    %1171 = vperm.xlu0 %1170, %v1166
    %v1172 = vpop.permute.xlu0 %1171
    %v1173 = vperm.slane %v1130, 6
    %v1174 = vlaneseq
    %v1175 = vshrl.u32 %v1174, 7
    %1177 = vset.pattern.permute.xlu0 %v1175
    %1178 = vperm.xlu0 %1177, %v1173
    %v1179 = vpop.permute.xlu0 %1178
    %v1180 = vperm.slane %v1130, 7
    %v1181 = vlaneseq
    %v1182 = vshrl.u32 %v1181, 7
    %1184 = vset.pattern.permute.xlu0 %v1182
    %1185 = vperm.xlu0 %1184, %v1180
    %v1186 = vpop.permute.xlu0 %1185
    %v1187 = vmul.f32 %v1013, %v1137
    %v1188 = vmul.f32 %v1014, %v1144
    %v1189 = vmul.f32 %v1015, %v1151
    %v1190 = vmul.f32 %v1016, %v1158
    %v1191 = vmul.f32 %v1017, %v1165
    %v1192 = vmul.f32 %v1018, %v1172
    %v1193 = vmul.f32 %v1019, %v1179
    %v1194 = vmul.f32 %v1020, %v1186
    %v1195 = vsel %vm424, %v1187, 0.0
    %v1196 = vsel %vm424, %v1188, 0.0
    %v1197 = vadd.f32 %v1195, %v1196
    %v1198 = vsel %vm424, %v1189, 0.0
    %v1199 = vadd.f32 %v1197, %v1198
    %v1200 = vsel %vm424, %v1190, 0.0
    %v1201 = vadd.f32 %v1199, %v1200
    %v1202 = vsel %vm424, %v1191, 0.0
    %v1203 = vadd.f32 %v1201, %v1202
    %v1204 = vsel %vm424, %v1192, 0.0
    %v1205 = vadd.f32 %v1203, %v1204
    %v1206 = vsel %vm424, %v1193, 0.0
    %v1207 = vadd.f32 %v1205, %v1206
    %v1208 = vsel %vm424, %v1194, 0.0
    %v1209 = vadd.f32 %v1207, %v1208
    %v1210 = vpack.c.bf16 %v1209, %v1209
    %v1211 = vld [vmem:[%s10] sm:$0xf]
    %v1212 = vld [vmem:[%s10 + $0x4] sm:$0xf]
    %v1213 = vld [vmem:[%s10 + $0x8] sm:$0xf]
    %v1214 = vld [vmem:[%s10 + $0xc] sm:$0xf]
    %v1215 = vld [vmem:[%s11] sm:$0x1]
    %v1217 = vperm.slane %v1215, 0
    %v1223 = vunpack.c.l.b16 %v1211
    %v1224 = vunpack.c.l.b16 %v1212
    %v1225 = vunpack.c.l.b16 %v1213
    %v1226 = vunpack.c.l.b16 %v1214
    %v1227 = vpack.c.b16 %v1224, %v1223
    %v1228 = vpack.c.b16 %v1226, %v1225
    %v1232 = vsel %vm424, %v1210, 0
    %1234 = vmatpush.bf16.msra.mxu0 0
    %1235 = vmatpush.bf16.msra.mxu0 0
    %1236 = vmatpush.bf16.msra.mxu0 0
    %1237 = vmatpush.bf16.msra.mxu0 0
    %1238 = vmatpush.bf16.msra.mxu0 0
    %1239 = vmatpush.bf16.msra.mxu0 0
    %1240 = vmatpush.bf16.msra.mxu0 %v1228
    %1241 = vmatpush.bf16.msra.mxu0 %v1227
    %1242 = vmatmul.bf16.gmra.mxu0 %v1232
    %v1243 = vpop.f32.mrf.mxu0
    %v1244 = vadd.f32 %v1217, %v1243
    %v1245 = vpop.f32.mrf.mxu0
    %1246 = vdwg.mxu0
    %1247 = vst [vmem:[#allocation15] sm:$0xff] %v1244
    // Predicated region
    $region74: #{tpu_custom_call.1} parent=1 // pred_check
      _
    $region75: #{tpu_custom_call.1} parent=1 // pred_check_branch
      %1249 = sbr.rel (0) target = $region77
    $region76: #{tpu_custom_call.1} parent=1 // pred_region
      %1251 = vsyncadd [#allocation6], 0
      %s1253 = sshll.u32 [#allocation15], 4
      %s1254 = int_to_ptr.vmem [resolvable:$true] %s1253
      %s1255 = sshll.u32 %s12, 4
      %s1256 = int_to_ptr.hbm [resolvable:$true] %s1255
      %1258 = dma.vmem_to_hbm [thread:$0]  %s1254, 128, %s1256, [#allocation6]
    $region77: #{tpu_custom_call.1} parent=1 // pred_fallthru
      _
    // Predicated region
    $region78: #{tpu_custom_call.1} parent=1 // pred_check
      _
    $region79: #{tpu_custom_call.1} parent=1 // pred_check_branch
      %1260 = sbr.rel (0) target = $region81
    $region80: #{tpu_custom_call.1} parent=1 // pred_region
      %1262 = dma.done [#allocation6], 128
    $region81: #{tpu_custom_call.1} parent=1 // pred_fallthru
      _
    %1263 = vsyncpa [#allocation5], 1
    %1264 = vsyncpa [#allocation8], 1
    %1265 = vsyncpa [#allocation11], 1
    %1266 = vsyncpa [#allocation14], 1
    %1267 = vsyncpa [#allocation6], 1

</llo_original>
